<compile_context>
chip_gen: v7x
topology: tpu7x:2x2x1
jax: 0.10.0
libtpu: 0.0.40
codegen_flags: <defaults>
</compile_context>

<pallas_src>
import numpy as np
import jax
import jax.numpy as jnp
from jax.experimental import pallas as pl
from jax.experimental.pallas import tpu as pltpu


# ----------------------------------------------------------------------------
# Resampling matrices (host-side glue, computed once)
# ----------------------------------------------------------------------------
def _adaptive_pool_matrix(out_size, in_size):
    """Row-stochastic matrix implementing 1-D adaptive average pooling (PyTorch semantics)."""
    m = np.zeros((out_size, in_size), np.float32)
    for i in range(out_size):
        start = (i * in_size) // out_size
        end = -((-(i + 1) * in_size) // out_size)  # ceil((i+1)*in/out)
        m[i, start:end] = 1.0 / (end - start)
    return m


def _bilinear_upsample_matrix(out_size, in_size):
    """Matrix implementing 1-D linear interpolation, align_corners=False (PyTorch semantics)."""
    m = np.zeros((out_size, in_size), np.float32)
    scale = in_size / out_size
    for o in range(out_size):
        src = max((o + 0.5) * scale - 0.5, 0.0)
        i0 = min(int(np.floor(src)), in_size - 1)
        i1 = min(i0 + 1, in_size - 1)
        frac = src - i0
        m[o, i0] += 1.0 - frac
        m[o, i1] += frac
    return m


def build_resample_mats(pool_sizes, h, w, dtype=jnp.bfloat16):
    """Returns dict p -> (poolT (H*W, p*p), upT (p*p, H*W)) for p != 1 (p=1 handled in-kernel)."""
    mats = {}
    for p in pool_sizes:
        if p == 1:
            continue
        pool2d = np.kron(_adaptive_pool_matrix(p, h), _adaptive_pool_matrix(p, w))        # (p*p, HW)
        up2d = np.kron(_bilinear_upsample_matrix(h, p), _bilinear_upsample_matrix(w, p))  # (HW, p*p)
        mats[p] = (jnp.asarray(pool2d.T, dtype=dtype),   # x(C,HW) @ poolT -> pooled (C, p*p)
                   jnp.asarray(up2d.T, dtype=dtype))     # feat(Bc,p*p) @ upT -> up (Bc, HW)
    return mats


# ----------------------------------------------------------------------------
# Parameter construction (deterministic, BN folded into 1x1 convs, (out,in) orientation)
# ----------------------------------------------------------------------------
def _fold_bn(w_oi, key, eps=1e-5):
    c = w_oi.shape[0]
    kg, kb, km, kv = jax.random.split(key, 4)
    gamma = 0.5 + jax.random.uniform(kg, (c,), jnp.float32)
    beta = 0.1 * jax.random.normal(kb, (c,), jnp.float32)
    mean = 0.1 * jax.random.normal(km, (c,), jnp.float32)
    var = 0.5 + jax.random.uniform(kv, (c,), jnp.float32)
    scale = gamma / jnp.sqrt(var + eps)
    return w_oi * scale[:, None], (beta - mean * scale)[:, None]


def init_params(key, in_channels, out_channels, pool_sizes):
    nb = len(pool_sizes) + 1
    assert out_channels % nb == 0, \
        "out_channels must be divisible by len(pool_sizes)+1 (matches the PyTorch concat width)"
    bc = out_channels // nb
    total = bc * nb
    keys = jax.random.split(key, 2 * nb + 2)

    params = {'w_branch': [], 'b_branch': []}
    for i in range(len(pool_sizes)):
        w = 0.1 * jax.random.normal(keys[2 * i], (bc, in_channels), jnp.float32)
        w, b = _fold_bn(w, keys[2 * i + 1])
        params['w_branch'].append(w.astype(jnp.bfloat16))
        params['b_branch'].append(b)                                   # (bc, 1) f32
    w = 0.1 * jax.random.normal(keys[2 * len(pool_sizes)], (bc, in_channels), jnp.float32)
    w, b = _fold_bn(w, keys[2 * len(pool_sizes) + 1])
    params['w_orig'] = w.astype(jnp.bfloat16)
    params['b_orig'] = b
    wf = 0.1 * jax.random.normal(keys[2 * nb], (out_channels, total), jnp.float32)
    wf, b_fus = _fold_bn(wf, keys[2 * nb + 1])
    params['wf'] = wf.astype(jnp.bfloat16)                             # (Cout, total)
    params['b_fus'] = b_fus                                            # (Cout, 1) f32
    return params


# ----------------------------------------------------------------------------
# Pallas kernel (b_blk batch elements per grid step)
# ----------------------------------------------------------------------------
def make_kernel(pool_sizes, bc):
    non1 = tuple(p for p in pool_sizes if p != 1)
    n_ones = sum(1 for p in pool_sizes if p == 1)
    pp_off = []
    off = 0
    for p in non1:
        pp_off.append(off)
        off += p * p

    def kernel(*refs):
        it = iter(refs)
        x_ref = next(it)                                                  # (b_blk, Cin, HW) bf16
        poolT_all_ref = next(it) if non1 else None                        # (HW, sum p^2) bf16
        non1_ops = [(next(it), next(it), next(it)) for _ in non1]         # (upT, w, b)
        one_ops = [(next(it), next(it), next(it)) for _ in range(n_ones)]  # (w, b, wf_cols)
        w_orig_ref = next(it)
        b_orig_ref = next(it)
        wf_ref = next(it)                                                 # (Cout, total_k) bf16
        b_fus_ref = next(it)                                              # (Cout, 1) f32
        out_ref = next(it)                                                # (b_blk, Cout, HW)
        cat_ref = next(it)                                                # (total_k, b_blk*HW) bf16

        b_blk, _, hw = x_ref.shape
        n_non1 = len(non1)

        extra_bias = []                                                   # per-batch (Cout,1) or None
        for b in range(b_blk):
            x_b = x_ref[b]                                                # (Cin, HW) bf16

            if non1:
                # all adaptive poolings via ONE matmul over the flattened spatial (lane) axis
                pooled_all = jnp.dot(x_b, poolT_all_ref[...],
                                     preferred_element_type=jnp.float32)  # (Cin, sum p^2)
                pooled_all = pooled_all.astype(jnp.bfloat16)
                for j, p in enumerate(non1):
                    upT_ref, w_ref, b_ref = non1_ops[j]
                    pooled_j = pooled_all[:, pp_off[j]:pp_off[j] + p * p]
                    # 1x1 conv (+ folded BN) + ReLU at pooled resolution
                    feat = jnp.maximum(
                        jnp.dot(w_ref[...], pooled_j,
                                preferred_element_type=jnp.float32) + b_ref[...], 0.0)
                    # bilinear upsample (align_corners=False) as a matmul, lane dim = HW (dense)
                    up = jnp.dot(feat.astype(jnp.bfloat16), upT_ref[...],
                                 preferred_element_type=jnp.float32)      # (Bc, HW)
                    cat_ref[pl.ds(j * bc, bc), pl.ds(b * hw, hw)] = up.astype(jnp.bfloat16)

            # p == 1 branches: rank-1 across HW -> folded into the fusion bias column.
            col = None
            if one_ops:
                pooled_1 = jnp.mean(x_b.astype(jnp.float32), axis=-1,
                                    keepdims=True).astype(jnp.bfloat16)   # (Cin, 1)
                for (w_ref, b_ref, wfc_ref) in one_ops:
                    feat = jnp.maximum(
                        jnp.dot(w_ref[...], pooled_1,
                                preferred_element_type=jnp.float32) + b_ref[...], 0.0)
                    c = jnp.dot(wfc_ref[...], feat.astype(jnp.bfloat16),
                                preferred_element_type=jnp.float32)        # (Cout, 1)
                    col = c if col is None else col + c
            extra_bias.append(col)

            # original-resolution branch
            orig = jnp.maximum(
                jnp.dot(w_orig_ref[...], x_b, preferred_element_type=jnp.float32)
                + b_orig_ref[...], 0.0)                                    # (Bc, HW)
            cat_ref[pl.ds(n_non1 * bc, bc), pl.ds(b * hw, hw)] = orig.astype(jnp.bfloat16)

        # single fusion conv over the bf16 concat slab (all batch elements at once)
        fused = jnp.dot(wf_ref[...], cat_ref[...],
                        preferred_element_type=jnp.float32)                # (Cout, b_blk*HW)
        for b in range(b_blk):
            bias = b_fus_ref[...]
            if extra_bias[b] is not None:
                bias = bias + extra_bias[b]
            out_ref[b] = jnp.maximum(fused[:, b * hw:(b + 1) * hw] + bias,
                                     0.0).astype(out_ref.dtype)

    return kernel


def lightweight_pyramid_pooling(x_nchw, params, pool_sizes, res_mats,
                                out_dtype=jnp.bfloat16):
    n, cin, h, w = x_nchw.shape
    hw = h * w
    cout = params['b_fus'].shape[0]
    nb = len(pool_sizes)
    total = params['wf'].shape[1]
    bc = total // (nb + 1)
    non1_idx = [i for i, p in enumerate(pool_sizes) if p != 1]
    one_idx = [i for i, p in enumerate(pool_sizes) if p == 1]
    total_k = (len(non1_idx) + 1) * bc                 # p==1 branches folded into the bias

    # batch block: amortize per-step overhead / widen fusion lanes at small HW (must divide n)
    target = max(1, -(-2048 // hw))
    b_blk = 1
    for d in range(min(n, target), 0, -1):
        if n % d == 0:
            b_blk = d
            break

    # channels on sublanes, H*W on lanes: pure reshape, no NCHW<->NHWC transpose round trips
    x_flat = x_nchw.reshape(n, cin, hw).astype(jnp.bfloat16)

    wf = params['wf']
    # fusion weight columns restricted to the rows that actually live in the slab
    wf_main = jnp.concatenate(
        [wf[:, i * bc:(i + 1) * bc] for i in non1_idx]
        + [wf[:, nb * bc:(nb + 1) * bc]], axis=1)      # (Cout, total_k)

    vmem_resident = pl.BlockSpec(memory_space=pltpu.MemorySpace.VMEM)   # whole-array resident
    args = [x_flat]
    in_specs = [pl.BlockSpec((b_blk, cin, hw), lambda i: (i, 0, 0))]

    def add(arr):
        args.append(arr)
        in_specs.append(vmem_resident)

    if non1_idx:
        # merged pooling matrix (one x-streaming matmul for all p != 1 branches)
        add(jnp.concatenate([res_mats[pool_sizes[i]][0] for i in non1_idx], axis=1))
    for i in non1_idx:
        add(res_mats[pool_sizes[i]][1])                # upT (p*p, HW)
        add(params['w_branch'][i])
        add(params['b_branch'][i])
    for i in one_idx:
        add(params['w_branch'][i])
        add(params['b_branch'][i])
        add(wf[:, i * bc:(i + 1) * bc])                # fusion columns of the folded branch
    add(params['w_orig'])
    add(params['b_orig'])
    add(wf_main)
    add(params['b_fus'])

    # VMEM limit derived from the actual resident footprint (not a hardcoded 32 MiB)
    out_itemsize = jnp.dtype(out_dtype).itemsize
    resident_bytes = sum(int(a.size) * a.dtype.itemsize for a in args[1:])
    x_blk_bytes = b_blk * cin * hw * 2
    out_blk_bytes = b_blk * cout * hw * out_itemsize
    slab_bytes = total_k * b_blk * hw * 2
    interm_bytes = (cout * b_blk * hw + (cin + 2 * bc) * hw) * 4
    footprint = resident_bytes + 2 * (x_blk_bytes + out_blk_bytes) + slab_bytes + interm_bytes
    vmem_limit = int(min(max(2 * footprint + (8 << 20), 32 << 20), 100 << 20))

    # advisory cost estimate for XLA scheduling around the custom call
    sum_pp = sum(pool_sizes[i] ** 2 for i in non1_idx)
    flops = 2 * cin * hw * sum_pp
    for i in non1_idx:
        pp = pool_sizes[i] ** 2
        flops += 2 * bc * cin * pp + 2 * bc * pp * hw
    for _ in one_idx:
        flops += cin * hw + 2 * bc * cin + 2 * cout * bc
    flops += 2 * bc * cin * hw
    flops += 2 * cout * total_k * hw
    flops *= n
    bytes_accessed = int(x_flat.size * x_flat.dtype.itemsize
                         + n * cout * hw * out_itemsize + resident_bytes)

    out_flat = pl.pallas_call(
        make_kernel(tuple(pool_sizes), bc),
        out_shape=jax.ShapeDtypeStruct((n, cout, hw), out_dtype),
        grid=(n // b_blk,),
        in_specs=in_specs,
        out_specs=pl.BlockSpec((b_blk, cout, hw), lambda i: (i, 0, 0)),
        scratch_shapes=[pltpu.VMEM((total_k, b_blk * hw), jnp.bfloat16)],
        compiler_params=pltpu.CompilerParams(
            dimension_semantics=("parallel",),
            vmem_limit_bytes=vmem_limit),
        cost_estimate=pl.CostEstimate(flops=int(flops), transcendentals=0,
                                      bytes_accessed=bytes_accessed),
    )(*args)
    return out_flat.reshape(n, cout, h, w)


# ----------------------------------------------------------------------------
# Pure-JAX reference (same math, same bf16 operand rounding) for a sanity check
# ----------------------------------------------------------------------------
def ref_forward(x_bf16, params, pool_sizes, res_mats):
    xf = x_bf16.astype(jnp.float32)                     # (N, Cin, HW)
    n, cin, hw = xf.shape
    feats = []
    for i, p in enumerate(pool_sizes):
        wb = params['w_branch'][i].astype(jnp.float32)
        bb = params['b_branch'][i]
        if p == 1:
            pooled = jnp.mean(xf, axis=-1, keepdims=True)
            pooled = pooled.astype(jnp.bfloat16).astype(jnp.float32)
            feat = jnp.maximum(jnp.einsum('bc,ncp->nbp', wb, pooled) + bb, 0.0)
            up = jnp.broadcast_to(feat, (n, feat.shape[1], hw))
        else:
            poolT = res_mats[p][0].astype(jnp.float32)
            upT = res_mats[p][1].astype(jnp.float32)
            pooled = jnp.einsum('nch,hp->ncp', xf, poolT)
            pooled = pooled.astype(jnp.bfloat16).astype(jnp.float32)
            feat = jnp.maximum(jnp.einsum('bc,ncp->nbp', wb, pooled) + bb, 0.0)
            up = jnp.einsum('nbp,ph->nbh',
                            feat.astype(jnp.bfloat16).astype(jnp.float32), upT)
        feats.append(up)
    orig = jnp.maximum(
        jnp.einsum('bc,nch->nbh', params['w_orig'].astype(jnp.float32), xf)
        + params['b_orig'], 0.0)
    feats.append(orig)
    cat = jnp.concatenate(feats, axis=1).astype(jnp.bfloat16).astype(jnp.float32)
    out = jnp.einsum('ob,nbh->noh', params['wf'].astype(jnp.float32), cat) + params['b_fus']
    return jnp.maximum(out, 0.0)


if __name__ == "__main__":
    key = jax.random.PRNGKey(0)
    N, Cin, H, W = 2, 4, 16, 16
    Cout = 32                        # branch_channels = 32 // 4 = 8
    pool_sizes = [1, 2, 4]

    kx, kp = jax.random.split(key)
    x = jax.random.normal(kx, (N, Cin, H, W), jnp.float32)
    params = init_params(kp, Cin, Cout, pool_sizes)
    res_mats = build_resample_mats(pool_sizes, H, W)

    out = lightweight_pyramid_pooling(x, params, pool_sizes, res_mats)
    out = jax.block_until_ready(out)

    # sanity check against a same-math pure-JAX reference (kernel output is bf16 by default)
    x_flat = x.reshape(N, Cin, H * W).astype(jnp.bfloat16)
    ref = ref_forward(x_flat, params, pool_sizes, res_mats).reshape(N, Cout, H, W)

    assert out.shape == (N, Cout, H, W)
    err = float(jnp.max(jnp.abs(out.astype(jnp.float32) - ref)))
    assert err < 3e-2, err
    print("KERNEL_OK")
</pallas_src>

<mosaic_0001>
module attributes {stable_mosaic.version = 11 : i64} {
  func.func @kernel(%arg0: i32, %arg1: memref<2x4x256xbf16, #tpu.memory_space<vmem>>, %arg2: memref<256x20xbf16, #tpu.memory_space<vmem>>, %arg3: memref<4x256xbf16, #tpu.memory_space<vmem>>, %arg4: memref<8x4xbf16, #tpu.memory_space<vmem>>, %arg5: memref<8x1xf32, #tpu.memory_space<vmem>>, %arg6: memref<16x256xbf16, #tpu.memory_space<vmem>>, %arg7: memref<8x4xbf16, #tpu.memory_space<vmem>>, %arg8: memref<8x1xf32, #tpu.memory_space<vmem>>, %arg9: memref<8x4xbf16, #tpu.memory_space<vmem>>, %arg10: memref<8x1xf32, #tpu.memory_space<vmem>>, %arg11: memref<32x8xbf16, #tpu.memory_space<vmem>>, %arg12: memref<8x4xbf16, #tpu.memory_space<vmem>>, %arg13: memref<8x1xf32, #tpu.memory_space<vmem>>, %arg14: memref<32x24xbf16, #tpu.memory_space<vmem>>, %arg15: memref<32x1xf32, #tpu.memory_space<vmem>>, %arg16: memref<2x32x256xbf16, #tpu.memory_space<vmem>>, %arg17: memref<24x512xbf16, #tpu.memory_space<vmem>>) attributes {dimension_semantics = [#tpu.dimension_semantics<parallel>], iteration_bounds = array<i64: 1>, scalar_prefetch = 0 : i64, scratch_operands = 1 : i64, tpu.core_type = #tpu.core_type<tc>, window_params = [{transform_indices = @transform_0, window_bounds = array<i64: 2, 4, 256>}, {pipeline_mode = #tpu.pipeline_mode<synchronous>, transform_indices = @transform_1, window_bounds = array<i64: 256, 20>}, {pipeline_mode = #tpu.pipeline_mode<synchronous>, transform_indices = @transform_2, window_bounds = array<i64: 4, 256>}, {pipeline_mode = #tpu.pipeline_mode<synchronous>, transform_indices = @transform_3, window_bounds = array<i64: 8, 4>}, {pipeline_mode = #tpu.pipeline_mode<synchronous>, transform_indices = @transform_4, window_bounds = array<i64: 8, 1>}, {pipeline_mode = #tpu.pipeline_mode<synchronous>, transform_indices = @transform_5, window_bounds = array<i64: 16, 256>}, {pipeline_mode = #tpu.pipeline_mode<synchronous>, transform_indices = @transform_6, window_bounds = array<i64: 8, 4>}, {pipeline_mode = #tpu.pipeline_mode<synchronous>, transform_indices = @transform_7, window_bounds = array<i64: 8, 1>}, {pipeline_mode = #tpu.pipeline_mode<synchronous>, transform_indices = @transform_8, window_bounds = array<i64: 8, 4>}, {pipeline_mode = #tpu.pipeline_mode<synchronous>, transform_indices = @transform_9, window_bounds = array<i64: 8, 1>}, {pipeline_mode = #tpu.pipeline_mode<synchronous>, transform_indices = @transform_10, window_bounds = array<i64: 32, 8>}, {pipeline_mode = #tpu.pipeline_mode<synchronous>, transform_indices = @transform_11, window_bounds = array<i64: 8, 4>}, {pipeline_mode = #tpu.pipeline_mode<synchronous>, transform_indices = @transform_12, window_bounds = array<i64: 8, 1>}, {pipeline_mode = #tpu.pipeline_mode<synchronous>, transform_indices = @transform_13, window_bounds = array<i64: 32, 24>}, {pipeline_mode = #tpu.pipeline_mode<synchronous>, transform_indices = @transform_14, window_bounds = array<i64: 32, 1>}, {transform_indices = @transform_15, window_bounds = array<i64: 2, 32, 256>}]} {
    %c0 = arith.constant 0 : index
    %c0_0 = arith.constant 0 : index
    %c0_1 = arith.constant 0 : index
    %0 = vector.load %arg1[%c0, %c0_0, %c0_1] : memref<2x4x256xbf16, #tpu.memory_space<vmem>>, vector<1x4x256xbf16>
    %1 = vector.shape_cast %0 : vector<1x4x256xbf16> to vector<4x256xbf16>
    %c0_2 = arith.constant 0 : index
    %c0_3 = arith.constant 0 : index
    %2 = vector.load %arg2[%c0_2, %c0_3] : memref<256x20xbf16, #tpu.memory_space<vmem>>, vector<256x20xbf16>
    %cst = arith.constant dense<0.000000e+00> : vector<4x20xf32>
    %3 = tpu.matmul %1, %2, %cst {dimension_numbers = #tpu.dot_dimension_numbers<[1], [0], [0], [1], [0, 0, 1, 1], [], []>} : vector<4x256xbf16>, vector<256x20xbf16>, vector<4x20xf32> -> vector<4x20xf32>
    %4 = arith.truncf %3 : vector<4x20xf32> to vector<4x20xbf16>
    %5 = vector.extract_strided_slice %4 {offsets = [0, 0], sizes = [4, 4], strides = [1, 1]} : vector<4x20xbf16> to vector<4x4xbf16>
    %c0_4 = arith.constant 0 : index
    %c0_5 = arith.constant 0 : index
    %6 = vector.load %arg4[%c0_4, %c0_5] : memref<8x4xbf16, #tpu.memory_space<vmem>>, vector<8x4xbf16>
    %cst_6 = arith.constant dense<0.000000e+00> : vector<8x4xf32>
    %7 = tpu.matmul %6, %5, %cst_6 {dimension_numbers = #tpu.dot_dimension_numbers<[1], [0], [0], [1], [0, 0, 1, 1], [], []>} : vector<8x4xbf16>, vector<4x4xbf16>, vector<8x4xf32> -> vector<8x4xf32>
    %c0_7 = arith.constant 0 : index
    %c0_8 = arith.constant 0 : index
    %8 = vector.load %arg5[%c0_7, %c0_8] : memref<8x1xf32, #tpu.memory_space<vmem>>, vector<8x1xf32>
    %9 = vector.broadcast %8 : vector<8x1xf32> to vector<8x4xf32>
    %10 = arith.addf %7, %9 : vector<8x4xf32>
    %cst_9 = arith.constant 0.000000e+00 : f32
    %11 = vector.broadcast %cst_9 : f32 to vector<8x4xf32>
    %12 = arith.maximumf %10, %11 : vector<8x4xf32>
    %13 = arith.truncf %12 : vector<8x4xf32> to vector<8x4xbf16>
    %c0_10 = arith.constant 0 : index
    %c0_11 = arith.constant 0 : index
    %14 = vector.load %arg3[%c0_10, %c0_11] : memref<4x256xbf16, #tpu.memory_space<vmem>>, vector<4x256xbf16>
    %cst_12 = arith.constant dense<0.000000e+00> : vector<8x256xf32>
    %15 = tpu.matmul %13, %14, %cst_12 {dimension_numbers = #tpu.dot_dimension_numbers<[1], [0], [0], [1], [0, 0, 1, 1], [], []>} : vector<8x4xbf16>, vector<4x256xbf16>, vector<8x256xf32> -> vector<8x256xf32>
    %16 = arith.truncf %15 : vector<8x256xf32> to vector<8x256xbf16>
    %c0_13 = arith.constant 0 : index
    %c0_14 = arith.constant 0 : index
    %17 = vector.load %arg17[%c0_13, %c0_14] : memref<24x512xbf16, #tpu.memory_space<vmem>>, vector<8x256xbf16>
    tpu.vector_store %arg17[%c0_13, %c0_14], %16 {strides = array<i32>} : memref<24x512xbf16, #tpu.memory_space<vmem>>, vector<8x256xbf16>,
    %18 = vector.extract_strided_slice %4 {offsets = [0, 4], sizes = [4, 16], strides = [1, 1]} : vector<4x20xbf16> to vector<4x16xbf16>
    %c0_15 = arith.constant 0 : index
    %c0_16 = arith.constant 0 : index
    %19 = vector.load %arg7[%c0_15, %c0_16] : memref<8x4xbf16, #tpu.memory_space<vmem>>, vector<8x4xbf16>
    %cst_17 = arith.constant dense<0.000000e+00> : vector<8x16xf32>
    %20 = tpu.matmul %19, %18, %cst_17 {dimension_numbers = #tpu.dot_dimension_numbers<[1], [0], [0], [1], [0, 0, 1, 1], [], []>} : vector<8x4xbf16>, vector<4x16xbf16>, vector<8x16xf32> -> vector<8x16xf32>
    %c0_18 = arith.constant 0 : index
    %c0_19 = arith.constant 0 : index
    %21 = vector.load %arg8[%c0_18, %c0_19] : memref<8x1xf32, #tpu.memory_space<vmem>>, vector<8x1xf32>
    %22 = vector.broadcast %21 : vector<8x1xf32> to vector<8x16xf32>
    %23 = arith.addf %20, %22 : vector<8x16xf32>
    %cst_20 = arith.constant 0.000000e+00 : f32
    %24 = vector.broadcast %cst_20 : f32 to vector<8x16xf32>
    %25 = arith.maximumf %23, %24 : vector<8x16xf32>
    %26 = arith.truncf %25 : vector<8x16xf32> to vector<8x16xbf16>
    %c0_21 = arith.constant 0 : index
    %c0_22 = arith.constant 0 : index
    %27 = vector.load %arg6[%c0_21, %c0_22] : memref<16x256xbf16, #tpu.memory_space<vmem>>, vector<16x256xbf16>
    %cst_23 = arith.constant dense<0.000000e+00> : vector<8x256xf32>
    %28 = tpu.matmul %26, %27, %cst_23 {dimension_numbers = #tpu.dot_dimension_numbers<[1], [0], [0], [1], [0, 0, 1, 1], [], []>} : vector<8x16xbf16>, vector<16x256xbf16>, vector<8x256xf32> -> vector<8x256xf32>
    %29 = arith.truncf %28 : vector<8x256xf32> to vector<8x256xbf16>
    %c8 = arith.constant 8 : index
    %c0_24 = arith.constant 0 : index
    %30 = vector.load %arg17[%c8, %c0_24] : memref<24x512xbf16, #tpu.memory_space<vmem>>, vector<8x256xbf16>
    tpu.vector_store %arg17[%c8, %c0_24], %29 {strides = array<i32>} : memref<24x512xbf16, #tpu.memory_space<vmem>>, vector<8x256xbf16>,
    %31 = arith.extf %1 : vector<4x256xbf16> to vector<4x256xf32>
    %cst_25 = arith.constant dense<0.000000e+00> : vector<4xf32>
    %32 = vector.multi_reduction <add>, %31, %cst_25 [1] : vector<4x256xf32> to vector<4xf32>
    %33 = vector.shape_cast %32 : vector<4xf32> to vector<4x1xf32>
    %cst_26 = arith.constant 2.560000e+02 : f32
    %34 = vector.broadcast %cst_26 : f32 to vector<4x1xf32>
    %35 = arith.divf %33, %34 : vector<4x1xf32>
    %36 = arith.truncf %35 : vector<4x1xf32> to vector<4x1xbf16>
    %c0_27 = arith.constant 0 : index
    %c0_28 = arith.constant 0 : index
    %37 = vector.load %arg9[%c0_27, %c0_28] : memref<8x4xbf16, #tpu.memory_space<vmem>>, vector<8x4xbf16>
    %cst_29 = arith.constant dense<0.000000e+00> : vector<8x1xf32>
    %38 = tpu.matmul %37, %36, %cst_29 {dimension_numbers = #tpu.dot_dimension_numbers<[1], [0], [0], [1], [0, 0, 1, 1], [], []>} : vector<8x4xbf16>, vector<4x1xbf16>, vector<8x1xf32> -> vector<8x1xf32>
    %c0_30 = arith.constant 0 : index
    %c0_31 = arith.constant 0 : index
    %39 = vector.load %arg10[%c0_30, %c0_31] : memref<8x1xf32, #tpu.memory_space<vmem>>, vector<8x1xf32>
    %40 = arith.addf %38, %39 : vector<8x1xf32>
    %cst_32 = arith.constant 0.000000e+00 : f32
    %41 = vector.broadcast %cst_32 : f32 to vector<8x1xf32>
    %42 = arith.maximumf %40, %41 : vector<8x1xf32>
    %c0_33 = arith.constant 0 : index
    %c0_34 = arith.constant 0 : index
    %43 = vector.load %arg11[%c0_33, %c0_34] : memref<32x8xbf16, #tpu.memory_space<vmem>>, vector<32x8xbf16>
    %44 = arith.truncf %42 : vector<8x1xf32> to vector<8x1xbf16>
    %cst_35 = arith.constant dense<0.000000e+00> : vector<32x1xf32>
    %45 = tpu.matmul %43, %44, %cst_35 {dimension_numbers = #tpu.dot_dimension_numbers<[1], [0], [0], [1], [0, 0, 1, 1], [], []>} : vector<32x8xbf16>, vector<8x1xbf16>, vector<32x1xf32> -> vector<32x1xf32>
    %c0_36 = arith.constant 0 : index
    %c0_37 = arith.constant 0 : index
    %46 = vector.load %arg12[%c0_36, %c0_37] : memref<8x4xbf16, #tpu.memory_space<vmem>>, vector<8x4xbf16>
    %cst_38 = arith.constant dense<0.000000e+00> : vector<8x256xf32>
    %47 = tpu.matmul %46, %1, %cst_38 {dimension_numbers = #tpu.dot_dimension_numbers<[1], [0], [0], [1], [0, 0, 1, 1], [], []>} : vector<8x4xbf16>, vector<4x256xbf16>, vector<8x256xf32> -> vector<8x256xf32>
    %c0_39 = arith.constant 0 : index
    %c0_40 = arith.constant 0 : index
    %48 = vector.load %arg13[%c0_39, %c0_40] : memref<8x1xf32, #tpu.memory_space<vmem>>, vector<8x1xf32>
    %49 = vector.broadcast %48 : vector<8x1xf32> to vector<8x256xf32>
    %50 = arith.addf %47, %49 : vector<8x256xf32>
    %cst_41 = arith.constant 0.000000e+00 : f32
    %51 = vector.broadcast %cst_41 : f32 to vector<8x256xf32>
    %52 = arith.maximumf %50, %51 : vector<8x256xf32>
    %53 = arith.truncf %52 : vector<8x256xf32> to vector<8x256xbf16>
    %c16 = arith.constant 16 : index
    %c0_42 = arith.constant 0 : index
    %54 = vector.load %arg17[%c16, %c0_42] : memref<24x512xbf16, #tpu.memory_space<vmem>>, vector<8x256xbf16>
    tpu.vector_store %arg17[%c16, %c0_42], %53 {strides = array<i32>} : memref<24x512xbf16, #tpu.memory_space<vmem>>, vector<8x256xbf16>,
    %c1 = arith.constant 1 : index
    %c0_43 = arith.constant 0 : index
    %c0_44 = arith.constant 0 : index
    %55 = vector.load %arg1[%c1, %c0_43, %c0_44] : memref<2x4x256xbf16, #tpu.memory_space<vmem>>, vector<1x4x256xbf16>
    %56 = vector.shape_cast %55 : vector<1x4x256xbf16> to vector<4x256xbf16>
    %c0_45 = arith.constant 0 : index
    %c0_46 = arith.constant 0 : index
    %57 = vector.load %arg2[%c0_45, %c0_46] : memref<256x20xbf16, #tpu.memory_space<vmem>>, vector<256x20xbf16>
    %cst_47 = arith.constant dense<0.000000e+00> : vector<4x20xf32>
    %58 = tpu.matmul %56, %57, %cst_47 {dimension_numbers = #tpu.dot_dimension_numbers<[1], [0], [0], [1], [0, 0, 1, 1], [], []>} : vector<4x256xbf16>, vector<256x20xbf16>, vector<4x20xf32> -> vector<4x20xf32>
    %59 = arith.truncf %58 : vector<4x20xf32> to vector<4x20xbf16>
    %60 = vector.extract_strided_slice %59 {offsets = [0, 0], sizes = [4, 4], strides = [1, 1]} : vector<4x20xbf16> to vector<4x4xbf16>
    %c0_48 = arith.constant 0 : index
    %c0_49 = arith.constant 0 : index
    %61 = vector.load %arg4[%c0_48, %c0_49] : memref<8x4xbf16, #tpu.memory_space<vmem>>, vector<8x4xbf16>
    %cst_50 = arith.constant dense<0.000000e+00> : vector<8x4xf32>
    %62 = tpu.matmul %61, %60, %cst_50 {dimension_numbers = #tpu.dot_dimension_numbers<[1], [0], [0], [1], [0, 0, 1, 1], [], []>} : vector<8x4xbf16>, vector<4x4xbf16>, vector<8x4xf32> -> vector<8x4xf32>
    %c0_51 = arith.constant 0 : index
    %c0_52 = arith.constant 0 : index
    %63 = vector.load %arg5[%c0_51, %c0_52] : memref<8x1xf32, #tpu.memory_space<vmem>>, vector<8x1xf32>
    %64 = vector.broadcast %63 : vector<8x1xf32> to vector<8x4xf32>
    %65 = arith.addf %62, %64 : vector<8x4xf32>
    %cst_53 = arith.constant 0.000000e+00 : f32
    %66 = vector.broadcast %cst_53 : f32 to vector<8x4xf32>
    %67 = arith.maximumf %65, %66 : vector<8x4xf32>
    %68 = arith.truncf %67 : vector<8x4xf32> to vector<8x4xbf16>
    %c0_54 = arith.constant 0 : index
    %c0_55 = arith.constant 0 : index
    %69 = vector.load %arg3[%c0_54, %c0_55] : memref<4x256xbf16, #tpu.memory_space<vmem>>, vector<4x256xbf16>
    %cst_56 = arith.constant dense<0.000000e+00> : vector<8x256xf32>
    %70 = tpu.matmul %68, %69, %cst_56 {dimension_numbers = #tpu.dot_dimension_numbers<[1], [0], [0], [1], [0, 0, 1, 1], [], []>} : vector<8x4xbf16>, vector<4x256xbf16>, vector<8x256xf32> -> vector<8x256xf32>
    %71 = arith.truncf %70 : vector<8x256xf32> to vector<8x256xbf16>
    %c0_57 = arith.constant 0 : index
    %c256 = arith.constant 256 : index
    %72 = vector.load %arg17[%c0_57, %c256] : memref<24x512xbf16, #tpu.memory_space<vmem>>, vector<8x256xbf16>
    tpu.vector_store %arg17[%c0_57, %c256], %71 {strides = array<i32>} : memref<24x512xbf16, #tpu.memory_space<vmem>>, vector<8x256xbf16>,
    %73 = vector.extract_strided_slice %59 {offsets = [0, 4], sizes = [4, 16], strides = [1, 1]} : vector<4x20xbf16> to vector<4x16xbf16>
    %c0_58 = arith.constant 0 : index
    %c0_59 = arith.constant 0 : index
    %74 = vector.load %arg7[%c0_58, %c0_59] : memref<8x4xbf16, #tpu.memory_space<vmem>>, vector<8x4xbf16>
    %cst_60 = arith.constant dense<0.000000e+00> : vector<8x16xf32>
    %75 = tpu.matmul %74, %73, %cst_60 {dimension_numbers = #tpu.dot_dimension_numbers<[1], [0], [0], [1], [0, 0, 1, 1], [], []>} : vector<8x4xbf16>, vector<4x16xbf16>, vector<8x16xf32> -> vector<8x16xf32>
    %c0_61 = arith.constant 0 : index
    %c0_62 = arith.constant 0 : index
    %76 = vector.load %arg8[%c0_61, %c0_62] : memref<8x1xf32, #tpu.memory_space<vmem>>, vector<8x1xf32>
    %77 = vector.broadcast %76 : vector<8x1xf32> to vector<8x16xf32>
    %78 = arith.addf %75, %77 : vector<8x16xf32>
    %cst_63 = arith.constant 0.000000e+00 : f32
    %79 = vector.broadcast %cst_63 : f32 to vector<8x16xf32>
    %80 = arith.maximumf %78, %79 : vector<8x16xf32>
    %81 = arith.truncf %80 : vector<8x16xf32> to vector<8x16xbf16>
    %c0_64 = arith.constant 0 : index
    %c0_65 = arith.constant 0 : index
    %82 = vector.load %arg6[%c0_64, %c0_65] : memref<16x256xbf16, #tpu.memory_space<vmem>>, vector<16x256xbf16>
    %cst_66 = arith.constant dense<0.000000e+00> : vector<8x256xf32>
    %83 = tpu.matmul %81, %82, %cst_66 {dimension_numbers = #tpu.dot_dimension_numbers<[1], [0], [0], [1], [0, 0, 1, 1], [], []>} : vector<8x16xbf16>, vector<16x256xbf16>, vector<8x256xf32> -> vector<8x256xf32>
    %84 = arith.truncf %83 : vector<8x256xf32> to vector<8x256xbf16>
    %c8_67 = arith.constant 8 : index
    %c256_68 = arith.constant 256 : index
    %85 = vector.load %arg17[%c8_67, %c256_68] : memref<24x512xbf16, #tpu.memory_space<vmem>>, vector<8x256xbf16>
    tpu.vector_store %arg17[%c8_67, %c256_68], %84 {strides = array<i32>} : memref<24x512xbf16, #tpu.memory_space<vmem>>, vector<8x256xbf16>,
    %86 = arith.extf %56 : vector<4x256xbf16> to vector<4x256xf32>
    %cst_69 = arith.constant dense<0.000000e+00> : vector<4xf32>
    %87 = vector.multi_reduction <add>, %86, %cst_69 [1] : vector<4x256xf32> to vector<4xf32>
    %88 = vector.shape_cast %87 : vector<4xf32> to vector<4x1xf32>
    %cst_70 = arith.constant 2.560000e+02 : f32
    %89 = vector.broadcast %cst_70 : f32 to vector<4x1xf32>
    %90 = arith.divf %88, %89 : vector<4x1xf32>
    %91 = arith.truncf %90 : vector<4x1xf32> to vector<4x1xbf16>
    %c0_71 = arith.constant 0 : index
    %c0_72 = arith.constant 0 : index
    %92 = vector.load %arg9[%c0_71, %c0_72] : memref<8x4xbf16, #tpu.memory_space<vmem>>, vector<8x4xbf16>
    %cst_73 = arith.constant dense<0.000000e+00> : vector<8x1xf32>
    %93 = tpu.matmul %92, %91, %cst_73 {dimension_numbers = #tpu.dot_dimension_numbers<[1], [0], [0], [1], [0, 0, 1, 1], [], []>} : vector<8x4xbf16>, vector<4x1xbf16>, vector<8x1xf32> -> vector<8x1xf32>
    %c0_74 = arith.constant 0 : index
    %c0_75 = arith.constant 0 : index
    %94 = vector.load %arg10[%c0_74, %c0_75] : memref<8x1xf32, #tpu.memory_space<vmem>>, vector<8x1xf32>
    %95 = arith.addf %93, %94 : vector<8x1xf32>
    %cst_76 = arith.constant 0.000000e+00 : f32
    %96 = vector.broadcast %cst_76 : f32 to vector<8x1xf32>
    %97 = arith.maximumf %95, %96 : vector<8x1xf32>
    %c0_77 = arith.constant 0 : index
    %c0_78 = arith.constant 0 : index
    %98 = vector.load %arg11[%c0_77, %c0_78] : memref<32x8xbf16, #tpu.memory_space<vmem>>, vector<32x8xbf16>
    %99 = arith.truncf %97 : vector<8x1xf32> to vector<8x1xbf16>
    %cst_79 = arith.constant dense<0.000000e+00> : vector<32x1xf32>
    %100 = tpu.matmul %98, %99, %cst_79 {dimension_numbers = #tpu.dot_dimension_numbers<[1], [0], [0], [1], [0, 0, 1, 1], [], []>} : vector<32x8xbf16>, vector<8x1xbf16>, vector<32x1xf32> -> vector<32x1xf32>
    %c0_80 = arith.constant 0 : index
    %c0_81 = arith.constant 0 : index
    %101 = vector.load %arg12[%c0_80, %c0_81] : memref<8x4xbf16, #tpu.memory_space<vmem>>, vector<8x4xbf16>
    %cst_82 = arith.constant dense<0.000000e+00> : vector<8x256xf32>
    %102 = tpu.matmul %101, %56, %cst_82 {dimension_numbers = #tpu.dot_dimension_numbers<[1], [0], [0], [1], [0, 0, 1, 1], [], []>} : vector<8x4xbf16>, vector<4x256xbf16>, vector<8x256xf32> -> vector<8x256xf32>
    %c0_83 = arith.constant 0 : index
    %c0_84 = arith.constant 0 : index
    %103 = vector.load %arg13[%c0_83, %c0_84] : memref<8x1xf32, #tpu.memory_space<vmem>>, vector<8x1xf32>
    %104 = vector.broadcast %103 : vector<8x1xf32> to vector<8x256xf32>
    %105 = arith.addf %102, %104 : vector<8x256xf32>
    %cst_85 = arith.constant 0.000000e+00 : f32
    %106 = vector.broadcast %cst_85 : f32 to vector<8x256xf32>
    %107 = arith.maximumf %105, %106 : vector<8x256xf32>
    %108 = arith.truncf %107 : vector<8x256xf32> to vector<8x256xbf16>
    %c16_86 = arith.constant 16 : index
    %c256_87 = arith.constant 256 : index
    %109 = vector.load %arg17[%c16_86, %c256_87] : memref<24x512xbf16, #tpu.memory_space<vmem>>, vector<8x256xbf16>
    tpu.vector_store %arg17[%c16_86, %c256_87], %108 {strides = array<i32>} : memref<24x512xbf16, #tpu.memory_space<vmem>>, vector<8x256xbf16>,
    %c0_88 = arith.constant 0 : index
    %c0_89 = arith.constant 0 : index
    %110 = vector.load %arg14[%c0_88, %c0_89] : memref<32x24xbf16, #tpu.memory_space<vmem>>, vector<32x24xbf16>
    %c0_90 = arith.constant 0 : index
    %c0_91 = arith.constant 0 : index
    %111 = vector.load %arg17[%c0_90, %c0_91] : memref<24x512xbf16, #tpu.memory_space<vmem>>, vector<24x512xbf16>
    %cst_92 = arith.constant dense<0.000000e+00> : vector<32x512xf32>
    %112 = tpu.matmul %110, %111, %cst_92 {dimension_numbers = #tpu.dot_dimension_numbers<[1], [0], [0], [1], [0, 0, 1, 1], [], []>} : vector<32x24xbf16>, vector<24x512xbf16>, vector<32x512xf32> -> vector<32x512xf32>
    %c0_93 = arith.constant 0 : index
    %c0_94 = arith.constant 0 : index
    %113 = vector.load %arg15[%c0_93, %c0_94] : memref<32x1xf32, #tpu.memory_space<vmem>>, vector<32x1xf32>
    %114 = arith.addf %113, %45 : vector<32x1xf32>
    %115 = vector.extract_strided_slice %112 {offsets = [0, 0], sizes = [32, 256], strides = [1, 1]} : vector<32x512xf32> to vector<32x256xf32>
    %116 = vector.broadcast %114 : vector<32x1xf32> to vector<32x256xf32>
    %117 = arith.addf %115, %116 : vector<32x256xf32>
    %cst_95 = arith.constant 0.000000e+00 : f32
    %118 = vector.broadcast %cst_95 : f32 to vector<32x256xf32>
    %119 = arith.maximumf %117, %118 : vector<32x256xf32>
    %120 = arith.truncf %119 : vector<32x256xf32> to vector<32x256xbf16>
    %c0_96 = arith.constant 0 : index
    %c0_97 = arith.constant 0 : index
    %c0_98 = arith.constant 0 : index
    %121 = vector.load %arg16[%c0_96, %c0_97, %c0_98] : memref<2x32x256xbf16, #tpu.memory_space<vmem>>, vector<1x32x256xbf16>
    %122 = vector.shape_cast %121 : vector<1x32x256xbf16> to vector<32x256xbf16>
    %123 = vector.shape_cast %120 : vector<32x256xbf16> to vector<1x32x256xbf16>
    tpu.vector_store %arg16[%c0_96, %c0_97, %c0_98], %123 {strides = array<i32>} : memref<2x32x256xbf16, #tpu.memory_space<vmem>>, vector<1x32x256xbf16>,
    %c0_99 = arith.constant 0 : index
    %c0_100 = arith.constant 0 : index
    %124 = vector.load %arg15[%c0_99, %c0_100] : memref<32x1xf32, #tpu.memory_space<vmem>>, vector<32x1xf32>
    %125 = arith.addf %124, %100 : vector<32x1xf32>
    %126 = vector.extract_strided_slice %112 {offsets = [0, 256], sizes = [32, 256], strides = [1, 1]} : vector<32x512xf32> to vector<32x256xf32>
    %127 = vector.broadcast %125 : vector<32x1xf32> to vector<32x256xf32>
    %128 = arith.addf %126, %127 : vector<32x256xf32>
    %cst_101 = arith.constant 0.000000e+00 : f32
    %129 = vector.broadcast %cst_101 : f32 to vector<32x256xf32>
    %130 = arith.maximumf %128, %129 : vector<32x256xf32>
    %131 = arith.truncf %130 : vector<32x256xf32> to vector<32x256xbf16>
    %c1_102 = arith.constant 1 : index
    %c0_103 = arith.constant 0 : index
    %c0_104 = arith.constant 0 : index
    %132 = vector.load %arg16[%c1_102, %c0_103, %c0_104] : memref<2x32x256xbf16, #tpu.memory_space<vmem>>, vector<1x32x256xbf16>
    %133 = vector.shape_cast %132 : vector<1x32x256xbf16> to vector<32x256xbf16>
    %134 = vector.shape_cast %131 : vector<32x256xbf16> to vector<1x32x256xbf16>
    tpu.vector_store %arg16[%c1_102, %c0_103, %c0_104], %134 {strides = array<i32>} : memref<2x32x256xbf16, #tpu.memory_space<vmem>>, vector<1x32x256xbf16>,
    return
  }
  func.func @transform_0(%arg0: i32) -> (i32, i32, i32) {
    %c0_i32 = arith.constant 0 : i32
    %c0_i32_0 = arith.constant 0 : i32
    %c0_i32_1 = arith.constant 0 : i32
    return %arg0, %c0_i32, %c0_i32_0 : i32, i32, i32
  }
  func.func @transform_1(%arg0: i32) -> (i32, i32) {
    %c0_i32 = arith.constant 0 : i32
    %c0_i32_0 = arith.constant 0 : i32
    %c0_i32_1 = arith.constant 0 : i32
    return %c0_i32, %c0_i32_0 : i32, i32
  }
  func.func @transform_2(%arg0: i32) -> (i32, i32) {
    %c0_i32 = arith.constant 0 : i32
    %c0_i32_0 = arith.constant 0 : i32
    %c0_i32_1 = arith.constant 0 : i32
    return %c0_i32, %c0_i32_0 : i32, i32
  }
  func.func @transform_3(%arg0: i32) -> (i32, i32) {
    %c0_i32 = arith.constant 0 : i32
    %c0_i32_0 = arith.constant 0 : i32
    %c0_i32_1 = arith.constant 0 : i32
    return %c0_i32, %c0_i32_0 : i32, i32
  }
  func.func @transform_4(%arg0: i32) -> (i32, i32) {
    %c0_i32 = arith.constant 0 : i32
    %c0_i32_0 = arith.constant 0 : i32
    %c0_i32_1 = arith.constant 0 : i32
    return %c0_i32, %c0_i32_0 : i32, i32
  }
  func.func @transform_5(%arg0: i32) -> (i32, i32) {
    %c0_i32 = arith.constant 0 : i32
    %c0_i32_0 = arith.constant 0 : i32
    %c0_i32_1 = arith.constant 0 : i32
    return %c0_i32, %c0_i32_0 : i32, i32
  }
  func.func @transform_6(%arg0: i32) -> (i32, i32) {
    %c0_i32 = arith.constant 0 : i32
    %c0_i32_0 = arith.constant 0 : i32
    %c0_i32_1 = arith.constant 0 : i32
    return %c0_i32, %c0_i32_0 : i32, i32
  }
  func.func @transform_7(%arg0: i32) -> (i32, i32) {
    %c0_i32 = arith.constant 0 : i32
    %c0_i32_0 = arith.constant 0 : i32
    %c0_i32_1 = arith.constant 0 : i32
    return %c0_i32, %c0_i32_0 : i32, i32
  }
  func.func @transform_8(%arg0: i32) -> (i32, i32) {
    %c0_i32 = arith.constant 0 : i32
    %c0_i32_0 = arith.constant 0 : i32
    %c0_i32_1 = arith.constant 0 : i32
    return %c0_i32, %c0_i32_0 : i32, i32
  }
  func.func @transform_9(%arg0: i32) -> (i32, i32) {
    %c0_i32 = arith.constant 0 : i32
    %c0_i32_0 = arith.constant 0 : i32
    %c0_i32_1 = arith.constant 0 : i32
    return %c0_i32, %c0_i32_0 : i32, i32
  }
  func.func @transform_10(%arg0: i32) -> (i32, i32) {
    %c0_i32 = arith.constant 0 : i32
    %c0_i32_0 = arith.constant 0 : i32
    %c0_i32_1 = arith.constant 0 : i32
    return %c0_i32, %c0_i32_0 : i32, i32
  }
  func.func @transform_11(%arg0: i32) -> (i32, i32) {
    %c0_i32 = arith.constant 0 : i32
    %c0_i32_0 = arith.constant 0 : i32
    %c0_i32_1 = arith.constant 0 : i32
    return %c0_i32, %c0_i32_0 : i32, i32
  }
  func.func @transform_12(%arg0: i32) -> (i32, i32) {
    %c0_i32 = arith.constant 0 : i32
    %c0_i32_0 = arith.constant 0 : i32
    %c0_i32_1 = arith.constant 0 : i32
    return %c0_i32, %c0_i32_0 : i32, i32
  }
  func.func @transform_13(%arg0: i32) -> (i32, i32) {
    %c0_i32 = arith.constant 0 : i32
    %c0_i32_0 = arith.constant 0 : i32
    %c0_i32_1 = arith.constant 0 : i32
    return %c0_i32, %c0_i32_0 : i32, i32
  }
  func.func @transform_14(%arg0: i32) -> (i32, i32) {
    %c0_i32 = arith.constant 0 : i32
    %c0_i32_0 = arith.constant 0 : i32
    %c0_i32_1 = arith.constant 0 : i32
    return %c0_i32, %c0_i32_0 : i32, i32
  }
  func.func @transform_15(%arg0: i32) -> (i32, i32, i32) {
    %c0_i32 = arith.constant 0 : i32
    %c0_i32_0 = arith.constant 0 : i32
    %c0_i32_1 = arith.constant 0 : i32
    return %arg0, %c0_i32, %c0_i32_0 : i32, i32, i32
  }
}

</mosaic_0001>

<llo_original>
// kernel: tpu_custom_call.1
$region0: #{tpu_custom_call.1}
  #allocation0 [shape = 'u32[]', space=smem, size = 0x4, offset = 0x4, fixed_abs, tag = 'smem constant byte address 0x4 - core index']
  #allocation1 [shape = 'u32[144,128]{1,0:T(1,128)}', space=vmem, size = 0x12000, scoped, tag = 'internal scratch']
  #allocation2 [shape = 'bf16[24,512]{1,0:T(8,128)(2,1)}', space=vmem, size = 0x6000, scoped, tag = 'scratch operand']
  %s0 = inlined_call_operand.vmem [shape: bf16[2,4,256], index: 0, kind: input, shape index: {}]
  %s1 = inlined_call_operand.vmem [shape: bf16[256,20], index: 1, kind: input, shape index: {}]
  %s2 = inlined_call_operand.vmem [shape: bf16[4,256], index: 2, kind: input, shape index: {}]
  %s3 = inlined_call_operand.vmem [shape: bf16[8,4], index: 3, kind: input, shape index: {}]
  %s4 = inlined_call_operand.vmem [shape: f32[8,1], index: 4, kind: input, shape index: {}]
  %s5 = inlined_call_operand.vmem [shape: bf16[16,256], index: 5, kind: input, shape index: {}]
  %s6 = inlined_call_operand.vmem [shape: bf16[8,4], index: 6, kind: input, shape index: {}]
  %s7 = inlined_call_operand.vmem [shape: f32[8,1], index: 7, kind: input, shape index: {}]
  %s8 = inlined_call_operand.vmem [shape: bf16[8,4], index: 8, kind: input, shape index: {}]
  %s9 = inlined_call_operand.vmem [shape: f32[8,1], index: 9, kind: input, shape index: {}]
  %s10 = inlined_call_operand.vmem [shape: bf16[32,8], index: 10, kind: input, shape index: {}]
  %s11 = inlined_call_operand.vmem [shape: bf16[8,4], index: 11, kind: input, shape index: {}]
  %s12 = inlined_call_operand.vmem [shape: f32[8,1], index: 12, kind: input, shape index: {}]
  %s13 = inlined_call_operand.vmem [shape: bf16[32,24], index: 13, kind: input, shape index: {}]
  %s14 = inlined_call_operand.vmem [shape: f32[32,1], index: 14, kind: input, shape index: {}]
  %s15 = inlined_call_operand.hbm [shape: bf16[2,32,256], index: 15, kind: output, shape index: {}]
  %s16 = sld [smem:[#allocation0]]
  $region70: #{tpu_custom_call.1} parent=0
    _
  %s18 = ssub.s32 1, %s16
  %s19 = scalar_select 0, %s18, %s16
  $region1: #{tpu_custom_call.1} parent=0
    #allocation3 [shape = 'u8[32768]{0}', space=vmem, size = 0x8000, scoped, tag = 'output window, operand 0, single buffered']
    #allocation4 [shape = 's32[1]{0}', space=sflag, size = 0x4, scoped, tag = 'scoped memory for tpu_custom_call.1']
    %20 = vsyncpa [#allocation4], 0
    // Predicated region
    $region2: #{tpu_custom_call.1} parent=1 // pred_check
      _
    $region3: #{tpu_custom_call.1} parent=1 // pred_check_branch
      %22 = sbr.rel (0) target = $region5
    $region4: #{tpu_custom_call.1} parent=1 // pred_region
      _
    $region5: #{tpu_custom_call.1} parent=1 // pred_fallthru
      _
    // Predicated region
    $region6: #{tpu_custom_call.1} parent=1 // pred_check
      _
    $region7: #{tpu_custom_call.1} parent=1 // pred_check_branch
      %24 = sbr.rel (0) target = $region9
    $region8: #{tpu_custom_call.1} parent=1 // pred_region
      _
    $region9: #{tpu_custom_call.1} parent=1 // pred_fallthru
      _
    // Predicated region
    $region10: #{tpu_custom_call.1} parent=1 // pred_check
      _
    $region11: #{tpu_custom_call.1} parent=1 // pred_check_branch
      %26 = sbr.rel (0) target = $region13
    $region12: #{tpu_custom_call.1} parent=1 // pred_region
      _
    $region13: #{tpu_custom_call.1} parent=1 // pred_fallthru
      _
    // Predicated region
    $region14: #{tpu_custom_call.1} parent=1 // pred_check
      _
    $region15: #{tpu_custom_call.1} parent=1 // pred_check_branch
      %28 = sbr.rel (0) target = $region17
    $region16: #{tpu_custom_call.1} parent=1 // pred_region
      _
    $region17: #{tpu_custom_call.1} parent=1 // pred_fallthru
      _
    // Predicated region
    $region18: #{tpu_custom_call.1} parent=1 // pred_check
      _
    $region19: #{tpu_custom_call.1} parent=1 // pred_check_branch
      %30 = sbr.rel (0) target = $region21
    $region20: #{tpu_custom_call.1} parent=1 // pred_region
      _
    $region21: #{tpu_custom_call.1} parent=1 // pred_fallthru
      _
    // Predicated region
    $region22: #{tpu_custom_call.1} parent=1 // pred_check
      _
    $region23: #{tpu_custom_call.1} parent=1 // pred_check_branch
      %32 = sbr.rel (0) target = $region25
    $region24: #{tpu_custom_call.1} parent=1 // pred_region
      _
    $region25: #{tpu_custom_call.1} parent=1 // pred_fallthru
      _
    // Predicated region
    $region26: #{tpu_custom_call.1} parent=1 // pred_check
      _
    $region27: #{tpu_custom_call.1} parent=1 // pred_check_branch
      %34 = sbr.rel (0) target = $region29
    $region28: #{tpu_custom_call.1} parent=1 // pred_region
      _
    $region29: #{tpu_custom_call.1} parent=1 // pred_fallthru
      _
    // Predicated region
    $region30: #{tpu_custom_call.1} parent=1 // pred_check
      _
    $region31: #{tpu_custom_call.1} parent=1 // pred_check_branch
      %36 = sbr.rel (0) target = $region33
    $region32: #{tpu_custom_call.1} parent=1 // pred_region
      _
    $region33: #{tpu_custom_call.1} parent=1 // pred_fallthru
      _
    // Predicated region
    $region34: #{tpu_custom_call.1} parent=1 // pred_check
      _
    $region35: #{tpu_custom_call.1} parent=1 // pred_check_branch
      %38 = sbr.rel (0) target = $region37
    $region36: #{tpu_custom_call.1} parent=1 // pred_region
      _
    $region37: #{tpu_custom_call.1} parent=1 // pred_fallthru
      _
    // Predicated region
    $region38: #{tpu_custom_call.1} parent=1 // pred_check
      _
    $region39: #{tpu_custom_call.1} parent=1 // pred_check_branch
      %40 = sbr.rel (0) target = $region41
    $region40: #{tpu_custom_call.1} parent=1 // pred_region
      _
    $region41: #{tpu_custom_call.1} parent=1 // pred_fallthru
      _
    // Predicated region
    $region42: #{tpu_custom_call.1} parent=1 // pred_check
      _
    $region43: #{tpu_custom_call.1} parent=1 // pred_check_branch
      %42 = sbr.rel (0) target = $region45
    $region44: #{tpu_custom_call.1} parent=1 // pred_region
      _
    $region45: #{tpu_custom_call.1} parent=1 // pred_fallthru
      _
    // Predicated region
    $region46: #{tpu_custom_call.1} parent=1 // pred_check
      _
    $region47: #{tpu_custom_call.1} parent=1 // pred_check_branch
      %44 = sbr.rel (0) target = $region49
    $region48: #{tpu_custom_call.1} parent=1 // pred_region
      _
    $region49: #{tpu_custom_call.1} parent=1 // pred_fallthru
      _
    // Predicated region
    $region50: #{tpu_custom_call.1} parent=1 // pred_check
      _
    $region51: #{tpu_custom_call.1} parent=1 // pred_check_branch
      %46 = sbr.rel (0) target = $region53
    $region52: #{tpu_custom_call.1} parent=1 // pred_region
      _
    $region53: #{tpu_custom_call.1} parent=1 // pred_fallthru
      _
    // Predicated region
    $region54: #{tpu_custom_call.1} parent=1 // pred_check
      _
    $region55: #{tpu_custom_call.1} parent=1 // pred_check_branch
      %48 = sbr.rel (0) target = $region57
    $region56: #{tpu_custom_call.1} parent=1 // pred_region
      _
    $region57: #{tpu_custom_call.1} parent=1 // pred_fallthru
      _
    // Predicated region
    $region58: #{tpu_custom_call.1} parent=1 // pred_check
      _
    $region59: #{tpu_custom_call.1} parent=1 // pred_check_branch
      %50 = sbr.rel (0) target = $region61
    $region60: #{tpu_custom_call.1} parent=1 // pred_region
      _
    $region61: #{tpu_custom_call.1} parent=1 // pred_fallthru
      _
    %v52 = vld [vmem:[%s0] sm:$0xf]
    %v53 = vld [vmem:[%s1] sm:$0xf]
    %v54 = vld [vmem:[%s1 + $0x4] sm:$0xf]
    %v55 = vld [vmem:[%s1 + $0x8] sm:$0xf]
    %v56 = vld [vmem:[%s1 + $0xc] sm:$0xf]
    %v57 = vld [vmem:[%s1 + $0x10] sm:$0xf]
    %v58 = vld [vmem:[%s1 + $0x14] sm:$0xf]
    %v59 = vld [vmem:[%s1 + $0x18] sm:$0xf]
    %v60 = vld [vmem:[%s1 + $0x1c] sm:$0xf]
    %v61 = vld [vmem:[%s1 + $0x20] sm:$0xf]
    %v62 = vld [vmem:[%s1 + $0x24] sm:$0xf]
    %v63 = vld [vmem:[%s1 + $0x28] sm:$0xf]
    %v64 = vld [vmem:[%s1 + $0x2c] sm:$0xf]
    %v65 = vld [vmem:[%s1 + $0x30] sm:$0xf]
    %v66 = vld [vmem:[%s1 + $0x34] sm:$0xf]
    %v67 = vld [vmem:[%s1 + $0x38] sm:$0xf]
    %v68 = vld [vmem:[%s1 + $0x3c] sm:$0xf]
    %v69 = vld [vmem:[%s1 + $0x40] sm:$0xf]
    %v70 = vld [vmem:[%s1 + $0x44] sm:$0xf]
    %v71 = vld [vmem:[%s1 + $0x48] sm:$0xf]
    %v72 = vld [vmem:[%s1 + $0x4c] sm:$0xf]
    %v73 = vld [vmem:[%s1 + $0x50] sm:$0xf]
    %v74 = vld [vmem:[%s1 + $0x54] sm:$0xf]
    %v75 = vld [vmem:[%s1 + $0x58] sm:$0xf]
    %v76 = vld [vmem:[%s1 + $0x5c] sm:$0xf]
    %v77 = vld [vmem:[%s1 + $0x60] sm:$0xf]
    %v78 = vld [vmem:[%s1 + $0x64] sm:$0xf]
    %v79 = vld [vmem:[%s1 + $0x68] sm:$0xf]
    %v80 = vld [vmem:[%s1 + $0x6c] sm:$0xf]
    %v81 = vld [vmem:[%s1 + $0x70] sm:$0xf]
    %v82 = vld [vmem:[%s1 + $0x74] sm:$0xf]
    %v83 = vld [vmem:[%s1 + $0x78] sm:$0xf]
    %v84 = vld [vmem:[%s1 + $0x7c] sm:$0xf]
    %v87 = vunpack.c.l.s4 1983009808
    %v88 = vunpack.c.0.s8 %v87
    %v89 = vlaneseq
    %v90 = vshrl.u32 %v89, 7
    %v91 = vsub.s32 %v88, %v90
    %v92 = vrot.slane %v52, %v91
    %v93 = vcombine.high %v92, %v92
    %v128 = vunpack.c.l.b16 %v53
    %v129 = vunpack.c.l.b16 %v54
    %v130 = vunpack.c.l.b16 %v55
    %v131 = vunpack.c.l.b16 %v56
    %v132 = vunpack.c.l.b16 %v57
    %v133 = vunpack.c.l.b16 %v58
    %v134 = vunpack.c.l.b16 %v59
    %v135 = vunpack.c.l.b16 %v60
    %v136 = vunpack.c.l.b16 %v61
    %v137 = vunpack.c.l.b16 %v62
    %v138 = vunpack.c.l.b16 %v63
    %v139 = vunpack.c.l.b16 %v64
    %v140 = vunpack.c.l.b16 %v65
    %v141 = vunpack.c.l.b16 %v66
    %v142 = vunpack.c.l.b16 %v67
    %v143 = vunpack.c.l.b16 %v68
    %v144 = vunpack.c.l.b16 %v69
    %v145 = vunpack.c.l.b16 %v70
    %v146 = vunpack.c.l.b16 %v71
    %v147 = vunpack.c.l.b16 %v72
    %v148 = vunpack.c.l.b16 %v73
    %v149 = vunpack.c.l.b16 %v74
    %v150 = vunpack.c.l.b16 %v75
    %v151 = vunpack.c.l.b16 %v76
    %v152 = vunpack.c.l.b16 %v77
    %v153 = vunpack.c.l.b16 %v78
    %v154 = vunpack.c.l.b16 %v79
    %v155 = vunpack.c.l.b16 %v80
    %v156 = vunpack.c.l.b16 %v81
    %v157 = vunpack.c.l.b16 %v82
    %v158 = vunpack.c.l.b16 %v83
    %v159 = vunpack.c.l.b16 %v84
    %v160 = vpack.c.b16 %v129, %v128
    %v161 = vpack.c.b16 %v131, %v130
    %v162 = vpack.c.b16 %v133, %v132
    %v163 = vpack.c.b16 %v135, %v134
    %v164 = vpack.c.b16 %v137, %v136
    %v165 = vpack.c.b16 %v139, %v138
    %v166 = vpack.c.b16 %v141, %v140
    %v167 = vpack.c.b16 %v143, %v142
    %v168 = vpack.c.b16 %v145, %v144
    %v169 = vpack.c.b16 %v147, %v146
    %v170 = vpack.c.b16 %v149, %v148
    %v171 = vpack.c.b16 %v151, %v150
    %v172 = vpack.c.b16 %v153, %v152
    %v173 = vpack.c.b16 %v155, %v154
    %v174 = vpack.c.b16 %v157, %v156
    %v175 = vpack.c.b16 %v159, %v158
    %192 = vmatprep.subr.bf16.mxu0 0
    %193 = vmatpush1.bf16.msra.mxu0 %v160
    %194 = vmatprep.subr.bf16.mxu0 0
    %195 = vmatpush1.bf16.msra.mxu0 %v161
    %196 = vmatprep.subr.bf16.mxu0 0
    %197 = vmatpush1.bf16.msra.mxu0 %v162
    %198 = vmatprep.subr.bf16.mxu0 0
    %199 = vmatpush1.bf16.msra.mxu0 %v163
    %200 = vmatprep.subr.bf16.mxu0 0
    %201 = vmatpush1.bf16.msra.mxu0 %v164
    %202 = vmatprep.subr.bf16.mxu0 0
    %203 = vmatpush1.bf16.msra.mxu0 %v165
    %204 = vmatprep.subr.bf16.mxu0 0
    %205 = vmatpush1.bf16.msra.mxu0 %v166
    %206 = vmatprep.subr.bf16.mxu0 0
    %207 = vmatpush1.bf16.msra.mxu0 %v167
    %208 = vmatprep.subr.bf16.mxu0 0
    %209 = vmatpush1.bf16.msra.mxu0 %v168
    %210 = vmatprep.subr.bf16.mxu0 0
    %211 = vmatpush1.bf16.msra.mxu0 %v169
    %212 = vmatprep.subr.bf16.mxu0 0
    %213 = vmatpush1.bf16.msra.mxu0 %v170
    %214 = vmatprep.subr.bf16.mxu0 0
    %215 = vmatpush1.bf16.msra.mxu0 %v171
    %216 = vmatprep.subr.bf16.mxu0 0
    %217 = vmatpush1.bf16.msra.mxu0 %v172
    %218 = vmatprep.subr.bf16.mxu0 0
    %219 = vmatpush1.bf16.msra.mxu0 %v173
    %220 = vmatprep.subr.bf16.mxu0 0
    %221 = vmatpush1.bf16.msra.mxu0 %v174
    %222 = vmatprep.subr.bf16.mxu0 0
    %223 = vmatpush1.bf16.msra.mxu0 %v175
    %224 = vmatprep.mubr.bf16.mxu0 %v93
    %225 = vmatmul.mubr.bf16.gmra.mrb[0].mxu0 %v92
    %v226 = vpop.f32.mrb[0].mxu0
    %v227 = vadd.f32 0.0, %v226
    %v228 = vpop.f32.mrb[0].mxu0
    %v229 = vpop.f32.mrb[0].mxu0
    %v230 = vpop.f32.mrb[0].mxu0
    %231 = vdwg.mxu0
    %v232 = vpack.c.bf16 %v227, %v227
    %v233 = vld [vmem:[%s3] sm:$0xf]
    %v234 = vld [vmem:[%s4] sm:$0xff]
    %236 = vset.pattern.permute.xlu0 0
    %237 = vperm.xlu0 %236, %v234
    %v238 = vpop.permute.xlu0 %237
    %vm240 = vcmask 31744
    %v242 = vsel %vm240, %v233, 0
    %vm244 = vcmask 1041408
    %v246 = vsel %vm244, %v232, 0
    %248 = vmatprep.subr.bf16.mxu0 0
    %249 = vmatpush1.bf16.msra.mxu0 %v246
    %250 = vmatprep.subr.bf16.mxu0 0
    %251 = vmatpush1.bf16.msra.mxu0 0
    %252 = vmatprep.subr.bf16.mxu0 0
    %253 = vmatpush1.bf16.msra.mxu0 0
    %254 = vmatprep.subr.bf16.mxu0 0
    %255 = vmatpush1.bf16.msra.mxu0 0
    %256 = vmatprep.subr.bf16.mxu0 0
    %257 = vmatpush1.bf16.msra.mxu0 0
    %258 = vmatprep.subr.bf16.mxu0 0
    %259 = vmatpush1.bf16.msra.mxu0 0
    %260 = vmatprep.subr.bf16.mxu0 0
    %261 = vmatpush1.bf16.msra.mxu0 0
    %262 = vmatprep.subr.bf16.mxu0 0
    %263 = vmatpush1.bf16.msra.mxu0 0
    %264 = vmatprep.subr.bf16.mxu0 0
    %265 = vmatpush1.bf16.msra.mxu0 0
    %266 = vmatprep.subr.bf16.mxu0 0
    %267 = vmatpush1.bf16.msra.mxu0 0
    %268 = vmatprep.subr.bf16.mxu0 0
    %269 = vmatpush1.bf16.msra.mxu0 0
    %270 = vmatprep.subr.bf16.mxu0 0
    %271 = vmatpush1.bf16.msra.mxu0 0
    %272 = vmatprep.subr.bf16.mxu0 0
    %273 = vmatpush1.bf16.msra.mxu0 0
    %274 = vmatprep.subr.bf16.mxu0 0
    %275 = vmatpush1.bf16.msra.mxu0 0
    %276 = vmatprep.subr.bf16.mxu0 0
    %277 = vmatpush1.bf16.msra.mxu0 0
    %278 = vmatprep.subr.bf16.mxu0 0
    %279 = vmatpush1.bf16.msra.mxu0 0
    %280 = vmatprep.mubr.bf16.mxu0 0
    %281 = vmatmul.mubr.bf16.gmra.mrb[0].mxu0 %v242
    %v282 = vpop.f32.mrb[0].mxu0
    %v283 = vadd.f32 %v238, %v282
    %v284 = vpop.f32.mrb[0].mxu0
    %v285 = vpop.f32.mrb[0].mxu0
    %v286 = vpop.f32.mrb[0].mxu0
    %287 = vdwg.mxu0
    %v288 = vmax.f32 %v283, 0.0
    %v289 = vpack.c.bf16 %v288, %v288
    %v290 = vld [vmem:[%s2] sm:$0xf]
    %v293 = vunpack.c.l.s4 1983009808
    %v294 = vunpack.c.0.s8 %v293
    %v295 = vlaneseq
    %v296 = vshrl.u32 %v295, 7
    %v297 = vsub.s32 %v294, %v296
    %v298 = vrot.slane %v290, %v297
    %v299 = vcombine.high %v298, %v298
    %v301 = vsel %vm240, %v289, 0
    %v304 = vsel %vm244, %v298, 0
    %v307 = vsel %vm244, %v299, 0
    %309 = vmatprep.subr.bf16.mxu0 %v307
    %310 = vmatpush1.bf16.msra.mxu0 %v304
    %311 = vmatprep.subr.bf16.mxu0 0
    %312 = vmatpush1.bf16.msra.mxu0 0
    %313 = vmatprep.subr.bf16.mxu0 0
    %314 = vmatpush1.bf16.msra.mxu0 0
    %315 = vmatprep.subr.bf16.mxu0 0
    %316 = vmatpush1.bf16.msra.mxu0 0
    %317 = vmatprep.subr.bf16.mxu0 0
    %318 = vmatpush1.bf16.msra.mxu0 0
    %319 = vmatprep.subr.bf16.mxu0 0
    %320 = vmatpush1.bf16.msra.mxu0 0
    %321 = vmatprep.subr.bf16.mxu0 0
    %322 = vmatpush1.bf16.msra.mxu0 0
    %323 = vmatprep.subr.bf16.mxu0 0
    %324 = vmatpush1.bf16.msra.mxu0 0
    %325 = vmatprep.subr.bf16.mxu0 0
    %326 = vmatpush1.bf16.msra.mxu0 0
    %327 = vmatprep.subr.bf16.mxu0 0
    %328 = vmatpush1.bf16.msra.mxu0 0
    %329 = vmatprep.subr.bf16.mxu0 0
    %330 = vmatpush1.bf16.msra.mxu0 0
    %331 = vmatprep.subr.bf16.mxu0 0
    %332 = vmatpush1.bf16.msra.mxu0 0
    %333 = vmatprep.subr.bf16.mxu0 0
    %334 = vmatpush1.bf16.msra.mxu0 0
    %335 = vmatprep.subr.bf16.mxu0 0
    %336 = vmatpush1.bf16.msra.mxu0 0
    %337 = vmatprep.subr.bf16.mxu0 0
    %338 = vmatpush1.bf16.msra.mxu0 0
    %339 = vmatprep.subr.bf16.mxu0 0
    %340 = vmatpush1.bf16.msra.mxu0 0
    %341 = vmatprep.mubr.bf16.mxu0 0
    %342 = vmatmul.mubr.bf16.gmra.mrb[0].mxu0 %v301
    %v343 = vpop.f32.mrb[0].mxu0
    %v344 = vadd.f32 0.0, %v343
    %v345 = vpop.f32.mrb[0].mxu0
    %v346 = vadd.f32 0.0, %v345
    %v347 = vpop.f32.mrb[0].mxu0
    %v348 = vpop.f32.mrb[0].mxu0
    %349 = vdwg.mxu0
    %v350 = vpack.c.bf16 %v344, %v344
    %v351 = vpack.c.bf16 %v346, %v346
    %v354 = vunpack.c.l.b16 %v350
    %v355 = vunpack.c.l.b16 %v351
    %v356 = vpack.c.b16 %v355, %v354
    %358 = vst [vmem:[#allocation2] sm:$0xff] %v356
    %v359 = vld [vmem:[%s6] sm:$0xf]
    %v360 = vld [vmem:[%s7] sm:$0xff]
    %362 = vset.pattern.permute.xlu0 0
    %363 = vperm.xlu0 %362, %v360
    %v364 = vpop.permute.xlu0 %363
    %367 = vrot.lane.b32.xlu0 %v232, 124
    %v368 = vpop.permute.xlu0 %367
    %v370 = vsel %vm240, %v359, 0
    %v373 = vsel %vm244, %v368, 0
    %375 = vmatprep.subr.bf16.mxu0 0
    %376 = vmatpush1.bf16.msra.mxu0 %v373
    %377 = vmatprep.subr.bf16.mxu0 0
    %378 = vmatpush1.bf16.msra.mxu0 0
    %379 = vmatprep.subr.bf16.mxu0 0
    %380 = vmatpush1.bf16.msra.mxu0 0
    %381 = vmatprep.subr.bf16.mxu0 0
    %382 = vmatpush1.bf16.msra.mxu0 0
    %383 = vmatprep.subr.bf16.mxu0 0
    %384 = vmatpush1.bf16.msra.mxu0 0
    %385 = vmatprep.subr.bf16.mxu0 0
    %386 = vmatpush1.bf16.msra.mxu0 0
    %387 = vmatprep.subr.bf16.mxu0 0
    %388 = vmatpush1.bf16.msra.mxu0 0
    %389 = vmatprep.subr.bf16.mxu0 0
    %390 = vmatpush1.bf16.msra.mxu0 0
    %391 = vmatprep.subr.bf16.mxu0 0
    %392 = vmatpush1.bf16.msra.mxu0 0
    %393 = vmatprep.subr.bf16.mxu0 0
    %394 = vmatpush1.bf16.msra.mxu0 0
    %395 = vmatprep.subr.bf16.mxu0 0
    %396 = vmatpush1.bf16.msra.mxu0 0
    %397 = vmatprep.subr.bf16.mxu0 0
    %398 = vmatpush1.bf16.msra.mxu0 0
    %399 = vmatprep.subr.bf16.mxu0 0
    %400 = vmatpush1.bf16.msra.mxu0 0
    %401 = vmatprep.subr.bf16.mxu0 0
    %402 = vmatpush1.bf16.msra.mxu0 0
    %403 = vmatprep.subr.bf16.mxu0 0
    %404 = vmatpush1.bf16.msra.mxu0 0
    %405 = vmatprep.subr.bf16.mxu0 0
    %406 = vmatpush1.bf16.msra.mxu0 0
    %407 = vmatprep.mubr.bf16.mxu0 0
    %408 = vmatmul.mubr.bf16.gmra.mrb[0].mxu0 %v370
    %v409 = vpop.f32.mrb[0].mxu0
    %v410 = vadd.f32 %v364, %v409
    %v411 = vpop.f32.mrb[0].mxu0
    %v412 = vpop.f32.mrb[0].mxu0
    %v413 = vpop.f32.mrb[0].mxu0
    %414 = vdwg.mxu0
    %v415 = vmax.f32 %v410, 0.0
    %v416 = vpack.c.bf16 %v415, %v415
    %v417 = vld [vmem:[%s5] sm:$0xff]
    %v418 = vld [vmem:[%s5 + $0x8] sm:$0xff]
    %v421 = vunpack.c.l.b16 %v417
    %v422 = vunpack.c.h.b16 %v417
    %v423 = vunpack.c.l.b16 %v418
    %v424 = vunpack.c.h.b16 %v418
    %v425 = vpack.c.b16 %v423, %v421
    %v426 = vpack.c.b16 %v424, %v422
    %vm429 = vcmask 130048
    %v431 = vsel %vm429, %v416, 0
    %433 = vmatprep.subr.bf16.mxu0 %v426
    %434 = vmatpush1.bf16.msra.mxu0 %v425
    %435 = vmatprep.subr.bf16.mxu0 0
    %436 = vmatpush1.bf16.msra.mxu0 0
    %437 = vmatprep.subr.bf16.mxu0 0
    %438 = vmatpush1.bf16.msra.mxu0 0
    %439 = vmatprep.subr.bf16.mxu0 0
    %440 = vmatpush1.bf16.msra.mxu0 0
    %441 = vmatprep.subr.bf16.mxu0 0
    %442 = vmatpush1.bf16.msra.mxu0 0
    %443 = vmatprep.subr.bf16.mxu0 0
    %444 = vmatpush1.bf16.msra.mxu0 0
    %445 = vmatprep.subr.bf16.mxu0 0
    %446 = vmatpush1.bf16.msra.mxu0 0
    %447 = vmatprep.subr.bf16.mxu0 0
    %448 = vmatpush1.bf16.msra.mxu0 0
    %449 = vmatprep.subr.bf16.mxu0 0
    %450 = vmatpush1.bf16.msra.mxu0 0
    %451 = vmatprep.subr.bf16.mxu0 0
    %452 = vmatpush1.bf16.msra.mxu0 0
    %453 = vmatprep.subr.bf16.mxu0 0
    %454 = vmatpush1.bf16.msra.mxu0 0
    %455 = vmatprep.subr.bf16.mxu0 0
    %456 = vmatpush1.bf16.msra.mxu0 0
    %457 = vmatprep.subr.bf16.mxu0 0
    %458 = vmatpush1.bf16.msra.mxu0 0
    %459 = vmatprep.subr.bf16.mxu0 0
    %460 = vmatpush1.bf16.msra.mxu0 0
    %461 = vmatprep.subr.bf16.mxu0 0
    %462 = vmatpush1.bf16.msra.mxu0 0
    %463 = vmatprep.subr.bf16.mxu0 0
    %464 = vmatpush1.bf16.msra.mxu0 0
    %465 = vmatprep.mubr.bf16.mxu0 0
    %466 = vmatmul.mubr.bf16.gmra.mrb[0].mxu0 %v431
    %v467 = vpop.f32.mrb[0].mxu0
    %v468 = vadd.f32 0.0, %v467
    %v469 = vpop.f32.mrb[0].mxu0
    %v470 = vadd.f32 0.0, %v469
    %v471 = vpop.f32.mrb[0].mxu0
    %v472 = vpop.f32.mrb[0].mxu0
    %473 = vdwg.mxu0
    %v474 = vpack.c.bf16 %v468, %v468
    %v475 = vpack.c.bf16 %v470, %v470
    %v478 = vunpack.c.l.b16 %v474
    %v479 = vunpack.c.l.b16 %v475
    %v480 = vpack.c.b16 %v479, %v478
    %482 = vst [vmem:[#allocation2 + $0x10] sm:$0xff] %v480
    %v483 = vunpack.c.l.bf16 %v52
    %v485 = vcombine.high %v483, %v483
    %vm487 = vcmask 1043456
    %v488 = vsel %vm487, %v483, 0.0
    %v489 = vsel %vm487, %v485, 0.0
    %v490 = vadd.f32 %v488, %v489
    %491 = vadd.xlane.f32.xlu0 %v490
    %v492 = vpop.xlane.xlu0 %491
    %v493 = vrcp.pop 256.0
    %v494 = vmul.f32 %v492, %v493
    %v495 = vpack.c.bf16 %v494, %v494
    %v496 = vld [vmem:[%s8] sm:$0xf]
    %v497 = vld [vmem:[%s9] sm:$0xff]
    %v499 = vsel %vm240, %v496, 0
    %v502 = vsel %vm244, %v495, 0
    %504 = vmatprep.subr.bf16.mxu0 0
    %505 = vmatpush1.bf16.msra.mxu0 %v502
    %506 = vmatprep.subr.bf16.mxu0 0
    %507 = vmatpush1.bf16.msra.mxu0 0
    %508 = vmatprep.subr.bf16.mxu0 0
    %509 = vmatpush1.bf16.msra.mxu0 0
    %510 = vmatprep.subr.bf16.mxu0 0
    %511 = vmatpush1.bf16.msra.mxu0 0
    %512 = vmatprep.subr.bf16.mxu0 0
    %513 = vmatpush1.bf16.msra.mxu0 0
    %514 = vmatprep.subr.bf16.mxu0 0
    %515 = vmatpush1.bf16.msra.mxu0 0
    %516 = vmatprep.subr.bf16.mxu0 0
    %517 = vmatpush1.bf16.msra.mxu0 0
    %518 = vmatprep.subr.bf16.mxu0 0
    %519 = vmatpush1.bf16.msra.mxu0 0
    %520 = vmatprep.subr.bf16.mxu0 0
    %521 = vmatpush1.bf16.msra.mxu0 0
    %522 = vmatprep.subr.bf16.mxu0 0
    %523 = vmatpush1.bf16.msra.mxu0 0
    %524 = vmatprep.subr.bf16.mxu0 0
    %525 = vmatpush1.bf16.msra.mxu0 0
    %526 = vmatprep.subr.bf16.mxu0 0
    %527 = vmatpush1.bf16.msra.mxu0 0
    %528 = vmatprep.subr.bf16.mxu0 0
    %529 = vmatpush1.bf16.msra.mxu0 0
    %530 = vmatprep.subr.bf16.mxu0 0
    %531 = vmatpush1.bf16.msra.mxu0 0
    %532 = vmatprep.subr.bf16.mxu0 0
    %533 = vmatpush1.bf16.msra.mxu0 0
    %534 = vmatprep.subr.bf16.mxu0 0
    %535 = vmatpush1.bf16.msra.mxu0 0
    %536 = vmatprep.mubr.bf16.mxu0 0
    %537 = vmatmul.mubr.bf16.gmra.mrb[0].mxu0 %v499
    %v538 = vpop.f32.mrb[0].mxu0
    %v539 = vadd.f32 %v497, %v538
    %v540 = vpop.f32.mrb[0].mxu0
    %v541 = vpop.f32.mrb[0].mxu0
    %v542 = vpop.f32.mrb[0].mxu0
    %543 = vdwg.mxu0
    %v544 = vmax.f32 %v539, 0.0
    %v545 = vld [vmem:[%s10] sm:$0xf]
    %v546 = vld [vmem:[%s10 + $0x4] sm:$0xf]
    %v547 = vld [vmem:[%s10 + $0x8] sm:$0xf]
    %v548 = vld [vmem:[%s10 + $0xc] sm:$0xf]
    %v549 = vpack.c.bf16 %v544, %v544
    %v554 = vunpack.c.l.b16 %v545
    %v555 = vunpack.c.l.b16 %v546
    %v556 = vunpack.c.l.b16 %v547
    %v557 = vunpack.c.l.b16 %v548
    %v558 = vpack.c.b16 %v555, %v554
    %v559 = vpack.c.b16 %v557, %v556
    %vm560 = vcmask 64512
    %v562 = vsel %vm560, %v558, 0
    %v565 = vsel %vm560, %v559, 0
    %v568 = vsel %vm487, %v549, 0
    %570 = vmatprep.subr.bf16.mxu0 0
    %571 = vmatpush1.bf16.msra.mxu0 %v568
    %572 = vmatprep.subr.bf16.mxu0 0
    %573 = vmatpush1.bf16.msra.mxu0 0
    %574 = vmatprep.subr.bf16.mxu0 0
    %575 = vmatpush1.bf16.msra.mxu0 0
    %576 = vmatprep.subr.bf16.mxu0 0
    %577 = vmatpush1.bf16.msra.mxu0 0
    %578 = vmatprep.subr.bf16.mxu0 0
    %579 = vmatpush1.bf16.msra.mxu0 0
    %580 = vmatprep.subr.bf16.mxu0 0
    %581 = vmatpush1.bf16.msra.mxu0 0
    %582 = vmatprep.subr.bf16.mxu0 0
    %583 = vmatpush1.bf16.msra.mxu0 0
    %584 = vmatprep.subr.bf16.mxu0 0
    %585 = vmatpush1.bf16.msra.mxu0 0
    %586 = vmatprep.subr.bf16.mxu0 0
    %587 = vmatpush1.bf16.msra.mxu0 0
    %588 = vmatprep.subr.bf16.mxu0 0
    %589 = vmatpush1.bf16.msra.mxu0 0
    %590 = vmatprep.subr.bf16.mxu0 0
    %591 = vmatpush1.bf16.msra.mxu0 0
    %592 = vmatprep.subr.bf16.mxu0 0
    %593 = vmatpush1.bf16.msra.mxu0 0
    %594 = vmatprep.subr.bf16.mxu0 0
    %595 = vmatpush1.bf16.msra.mxu0 0
    %596 = vmatprep.subr.bf16.mxu0 0
    %597 = vmatpush1.bf16.msra.mxu0 0
    %598 = vmatprep.subr.bf16.mxu0 0
    %599 = vmatpush1.bf16.msra.mxu0 0
    %600 = vmatprep.subr.bf16.mxu0 0
    %601 = vmatpush1.bf16.msra.mxu0 0
    %602 = vmatprep.mubr.bf16.mxu0 0
    %603 = vmatmul.mubr.bf16.gmra.mrb[0].mxu0 %v562
    %v604 = vpop.f32.mrb[0].mxu0
    %v605 = vadd.f32 0.0, %v604
    %v606 = vpop.f32.mrb[0].mxu0
    %v607 = vpop.f32.mrb[0].mxu0
    %v608 = vadd.f32 0.0, %v607
    %v609 = vpop.f32.mrb[0].mxu0
    %610 = vmatprep.mubr.bf16.mxu0 0
    %611 = vmatmul.mubr.bf16.gmra.mrb[0].mxu0 %v565
    %v612 = vpop.f32.mrb[0].mxu0
    %v613 = vadd.f32 0.0, %v612
    %v614 = vpop.f32.mrb[0].mxu0
    %v615 = vpop.f32.mrb[0].mxu0
    %v616 = vadd.f32 0.0, %v615
    %v617 = vpop.f32.mrb[0].mxu0
    %618 = vdwg.mxu0
    %v619 = vld [vmem:[%s11] sm:$0xf]
    %v620 = vld [vmem:[%s12] sm:$0xff]
    %622 = vset.pattern.permute.xlu0 0
    %623 = vperm.xlu0 %622, %v620
    %v624 = vpop.permute.xlu0 %623
    %v627 = vsel %vm240, %v619, 0
    %v630 = vsel %vm244, %v92, 0
    %v633 = vsel %vm244, %v93, 0
    %635 = vmatprep.subr.bf16.mxu0 %v633
    %636 = vmatpush1.bf16.msra.mxu0 %v630
    %637 = vmatprep.subr.bf16.mxu0 0
    %638 = vmatpush1.bf16.msra.mxu0 0
    %639 = vmatprep.subr.bf16.mxu0 0
    %640 = vmatpush1.bf16.msra.mxu0 0
    %641 = vmatprep.subr.bf16.mxu0 0
    %642 = vmatpush1.bf16.msra.mxu0 0
    %643 = vmatprep.subr.bf16.mxu0 0
    %644 = vmatpush1.bf16.msra.mxu0 0
    %645 = vmatprep.subr.bf16.mxu0 0
    %646 = vmatpush1.bf16.msra.mxu0 0
    %647 = vmatprep.subr.bf16.mxu0 0
    %648 = vmatpush1.bf16.msra.mxu0 0
    %649 = vmatprep.subr.bf16.mxu0 0
    %650 = vmatpush1.bf16.msra.mxu0 0
    %651 = vmatprep.subr.bf16.mxu0 0
    %652 = vmatpush1.bf16.msra.mxu0 0
    %653 = vmatprep.subr.bf16.mxu0 0
    %654 = vmatpush1.bf16.msra.mxu0 0
    %655 = vmatprep.subr.bf16.mxu0 0
    %656 = vmatpush1.bf16.msra.mxu0 0
    %657 = vmatprep.subr.bf16.mxu0 0
    %658 = vmatpush1.bf16.msra.mxu0 0
    %659 = vmatprep.subr.bf16.mxu0 0
    %660 = vmatpush1.bf16.msra.mxu0 0
    %661 = vmatprep.subr.bf16.mxu0 0
    %662 = vmatpush1.bf16.msra.mxu0 0
    %663 = vmatprep.subr.bf16.mxu0 0
    %664 = vmatpush1.bf16.msra.mxu0 0
    %665 = vmatprep.subr.bf16.mxu0 0
    %666 = vmatpush1.bf16.msra.mxu0 0
    %667 = vmatprep.mubr.bf16.mxu0 0
    %668 = vmatmul.mubr.bf16.gmra.mrb[0].mxu0 %v627
    %v669 = vpop.f32.mrb[0].mxu0
    %v670 = vadd.f32 %v624, %v669
    %v671 = vpop.f32.mrb[0].mxu0
    %v672 = vadd.f32 %v624, %v671
    %v673 = vpop.f32.mrb[0].mxu0
    %v674 = vpop.f32.mrb[0].mxu0
    %675 = vdwg.mxu0
    %v676 = vmax.f32 %v670, 0.0
    %v677 = vmax.f32 %v672, 0.0
    %v678 = vpack.c.bf16 %v676, %v676
    %v679 = vpack.c.bf16 %v677, %v677
    %v682 = vunpack.c.l.b16 %v678
    %v683 = vunpack.c.l.b16 %v679
    %v684 = vpack.c.b16 %v683, %v682
    %686 = vst [vmem:[#allocation2 + $0x20] sm:$0xff] %v684
    %s687 = scalar_lea.vmem %s0, 4
    %v688 = vld [vmem:[%s687] sm:$0xf]
    %v689 = vld [vmem:[%s1] sm:$0xf]
    %v690 = vld [vmem:[%s1 + $0x4] sm:$0xf]
    %v691 = vld [vmem:[%s1 + $0x8] sm:$0xf]
    %v692 = vld [vmem:[%s1 + $0xc] sm:$0xf]
    %v693 = vld [vmem:[%s1 + $0x10] sm:$0xf]
    %v694 = vld [vmem:[%s1 + $0x14] sm:$0xf]
    %v695 = vld [vmem:[%s1 + $0x18] sm:$0xf]
    %v696 = vld [vmem:[%s1 + $0x1c] sm:$0xf]
    %v697 = vld [vmem:[%s1 + $0x20] sm:$0xf]
    %v698 = vld [vmem:[%s1 + $0x24] sm:$0xf]
    %v699 = vld [vmem:[%s1 + $0x28] sm:$0xf]
    %v700 = vld [vmem:[%s1 + $0x2c] sm:$0xf]
    %v701 = vld [vmem:[%s1 + $0x30] sm:$0xf]
    %v702 = vld [vmem:[%s1 + $0x34] sm:$0xf]
    %v703 = vld [vmem:[%s1 + $0x38] sm:$0xf]
    %v704 = vld [vmem:[%s1 + $0x3c] sm:$0xf]
    %v705 = vld [vmem:[%s1 + $0x40] sm:$0xf]
    %v706 = vld [vmem:[%s1 + $0x44] sm:$0xf]
    %v707 = vld [vmem:[%s1 + $0x48] sm:$0xf]
    %v708 = vld [vmem:[%s1 + $0x4c] sm:$0xf]
    %v709 = vld [vmem:[%s1 + $0x50] sm:$0xf]
    %v710 = vld [vmem:[%s1 + $0x54] sm:$0xf]
    %v711 = vld [vmem:[%s1 + $0x58] sm:$0xf]
    %v712 = vld [vmem:[%s1 + $0x5c] sm:$0xf]
    %v713 = vld [vmem:[%s1 + $0x60] sm:$0xf]
    %v714 = vld [vmem:[%s1 + $0x64] sm:$0xf]
    %v715 = vld [vmem:[%s1 + $0x68] sm:$0xf]
    %v716 = vld [vmem:[%s1 + $0x6c] sm:$0xf]
    %v717 = vld [vmem:[%s1 + $0x70] sm:$0xf]
    %v718 = vld [vmem:[%s1 + $0x74] sm:$0xf]
    %v719 = vld [vmem:[%s1 + $0x78] sm:$0xf]
    %v720 = vld [vmem:[%s1 + $0x7c] sm:$0xf]
    %v723 = vunpack.c.l.s4 1983009808
    %v724 = vunpack.c.0.s8 %v723
    %v725 = vlaneseq
    %v726 = vshrl.u32 %v725, 7
    %v727 = vsub.s32 %v724, %v726
    %v728 = vrot.slane %v688, %v727
    %v729 = vcombine.high %v728, %v728
    %v764 = vunpack.c.l.b16 %v689
    %v765 = vunpack.c.l.b16 %v690
    %v766 = vunpack.c.l.b16 %v691
    %v767 = vunpack.c.l.b16 %v692
    %v768 = vunpack.c.l.b16 %v693
    %v769 = vunpack.c.l.b16 %v694
    %v770 = vunpack.c.l.b16 %v695
    %v771 = vunpack.c.l.b16 %v696
    %v772 = vunpack.c.l.b16 %v697
    %v773 = vunpack.c.l.b16 %v698
    %v774 = vunpack.c.l.b16 %v699
    %v775 = vunpack.c.l.b16 %v700
    %v776 = vunpack.c.l.b16 %v701
    %v777 = vunpack.c.l.b16 %v702
    %v778 = vunpack.c.l.b16 %v703
    %v779 = vunpack.c.l.b16 %v704
    %v780 = vunpack.c.l.b16 %v705
    %v781 = vunpack.c.l.b16 %v706
    %v782 = vunpack.c.l.b16 %v707
    %v783 = vunpack.c.l.b16 %v708
    %v784 = vunpack.c.l.b16 %v709
    %v785 = vunpack.c.l.b16 %v710
    %v786 = vunpack.c.l.b16 %v711
    %v787 = vunpack.c.l.b16 %v712
    %v788 = vunpack.c.l.b16 %v713
    %v789 = vunpack.c.l.b16 %v714
    %v790 = vunpack.c.l.b16 %v715
    %v791 = vunpack.c.l.b16 %v716
    %v792 = vunpack.c.l.b16 %v717
    %v793 = vunpack.c.l.b16 %v718
    %v794 = vunpack.c.l.b16 %v719
    %v795 = vunpack.c.l.b16 %v720
    %v796 = vpack.c.b16 %v765, %v764
    %v797 = vpack.c.b16 %v767, %v766
    %v798 = vpack.c.b16 %v769, %v768
    %v799 = vpack.c.b16 %v771, %v770
    %v800 = vpack.c.b16 %v773, %v772
    %v801 = vpack.c.b16 %v775, %v774
    %v802 = vpack.c.b16 %v777, %v776
    %v803 = vpack.c.b16 %v779, %v778
    %v804 = vpack.c.b16 %v781, %v780
    %v805 = vpack.c.b16 %v783, %v782
    %v806 = vpack.c.b16 %v785, %v784
    %v807 = vpack.c.b16 %v787, %v786
    %v808 = vpack.c.b16 %v789, %v788
    %v809 = vpack.c.b16 %v791, %v790
    %v810 = vpack.c.b16 %v793, %v792
    %v811 = vpack.c.b16 %v795, %v794
    %828 = vmatprep.subr.bf16.mxu0 0
    %829 = vmatpush1.bf16.msra.mxu0 %v796
    %830 = vmatprep.subr.bf16.mxu0 0
    %831 = vmatpush1.bf16.msra.mxu0 %v797
    %832 = vmatprep.subr.bf16.mxu0 0
    %833 = vmatpush1.bf16.msra.mxu0 %v798
    %834 = vmatprep.subr.bf16.mxu0 0
    %835 = vmatpush1.bf16.msra.mxu0 %v799
    %836 = vmatprep.subr.bf16.mxu0 0
    %837 = vmatpush1.bf16.msra.mxu0 %v800
    %838 = vmatprep.subr.bf16.mxu0 0
    %839 = vmatpush1.bf16.msra.mxu0 %v801
    %840 = vmatprep.subr.bf16.mxu0 0
    %841 = vmatpush1.bf16.msra.mxu0 %v802
    %842 = vmatprep.subr.bf16.mxu0 0
    %843 = vmatpush1.bf16.msra.mxu0 %v803
    %844 = vmatprep.subr.bf16.mxu0 0
    %845 = vmatpush1.bf16.msra.mxu0 %v804
    %846 = vmatprep.subr.bf16.mxu0 0
    %847 = vmatpush1.bf16.msra.mxu0 %v805
    %848 = vmatprep.subr.bf16.mxu0 0
    %849 = vmatpush1.bf16.msra.mxu0 %v806
    %850 = vmatprep.subr.bf16.mxu0 0
    %851 = vmatpush1.bf16.msra.mxu0 %v807
    %852 = vmatprep.subr.bf16.mxu0 0
    %853 = vmatpush1.bf16.msra.mxu0 %v808
    %854 = vmatprep.subr.bf16.mxu0 0
    %855 = vmatpush1.bf16.msra.mxu0 %v809
    %856 = vmatprep.subr.bf16.mxu0 0
    %857 = vmatpush1.bf16.msra.mxu0 %v810
    %858 = vmatprep.subr.bf16.mxu0 0
    %859 = vmatpush1.bf16.msra.mxu0 %v811
    %860 = vmatprep.mubr.bf16.mxu0 %v729
    %861 = vmatmul.mubr.bf16.gmra.mrb[0].mxu0 %v728
    %v862 = vpop.f32.mrb[0].mxu0
    %v863 = vadd.f32 0.0, %v862
    %v864 = vpop.f32.mrb[0].mxu0
    %v865 = vpop.f32.mrb[0].mxu0
    %v866 = vpop.f32.mrb[0].mxu0
    %867 = vdwg.mxu0
    %v868 = vpack.c.bf16 %v863, %v863
    %v869 = vld [vmem:[%s3] sm:$0xf]
    %v870 = vld [vmem:[%s4] sm:$0xff]
    %872 = vset.pattern.permute.xlu0 0
    %873 = vperm.xlu0 %872, %v870
    %v874 = vpop.permute.xlu0 %873
    %v877 = vsel %vm240, %v869, 0
    %v880 = vsel %vm244, %v868, 0
    %882 = vmatprep.subr.bf16.mxu0 0
    %883 = vmatpush1.bf16.msra.mxu0 %v880
    %884 = vmatprep.subr.bf16.mxu0 0
    %885 = vmatpush1.bf16.msra.mxu0 0
    %886 = vmatprep.subr.bf16.mxu0 0
    %887 = vmatpush1.bf16.msra.mxu0 0
    %888 = vmatprep.subr.bf16.mxu0 0
    %889 = vmatpush1.bf16.msra.mxu0 0
    %890 = vmatprep.subr.bf16.mxu0 0
    %891 = vmatpush1.bf16.msra.mxu0 0
    %892 = vmatprep.subr.bf16.mxu0 0
    %893 = vmatpush1.bf16.msra.mxu0 0
    %894 = vmatprep.subr.bf16.mxu0 0
    %895 = vmatpush1.bf16.msra.mxu0 0
    %896 = vmatprep.subr.bf16.mxu0 0
    %897 = vmatpush1.bf16.msra.mxu0 0
    %898 = vmatprep.subr.bf16.mxu0 0
    %899 = vmatpush1.bf16.msra.mxu0 0
    %900 = vmatprep.subr.bf16.mxu0 0
    %901 = vmatpush1.bf16.msra.mxu0 0
    %902 = vmatprep.subr.bf16.mxu0 0
    %903 = vmatpush1.bf16.msra.mxu0 0
    %904 = vmatprep.subr.bf16.mxu0 0
    %905 = vmatpush1.bf16.msra.mxu0 0
    %906 = vmatprep.subr.bf16.mxu0 0
    %907 = vmatpush1.bf16.msra.mxu0 0
    %908 = vmatprep.subr.bf16.mxu0 0
    %909 = vmatpush1.bf16.msra.mxu0 0
    %910 = vmatprep.subr.bf16.mxu0 0
    %911 = vmatpush1.bf16.msra.mxu0 0
    %912 = vmatprep.subr.bf16.mxu0 0
    %913 = vmatpush1.bf16.msra.mxu0 0
    %914 = vmatprep.mubr.bf16.mxu0 0
    %915 = vmatmul.mubr.bf16.gmra.mrb[0].mxu0 %v877
    %v916 = vpop.f32.mrb[0].mxu0
    %v917 = vadd.f32 %v874, %v916
    %v918 = vpop.f32.mrb[0].mxu0
    %v919 = vpop.f32.mrb[0].mxu0
    %v920 = vpop.f32.mrb[0].mxu0
    %921 = vdwg.mxu0
    %v922 = vmax.f32 %v917, 0.0
    %v923 = vpack.c.bf16 %v922, %v922
    %v924 = vld [vmem:[%s2] sm:$0xf]
    %v927 = vunpack.c.l.s4 1983009808
    %v928 = vunpack.c.0.s8 %v927
    %v929 = vlaneseq
    %v930 = vshrl.u32 %v929, 7
    %v931 = vsub.s32 %v928, %v930
    %v932 = vrot.slane %v924, %v931
    %v933 = vcombine.high %v932, %v932
    %v935 = vsel %vm240, %v923, 0
    %v938 = vsel %vm244, %v932, 0
    %v941 = vsel %vm244, %v933, 0
    %943 = vmatprep.subr.bf16.mxu0 %v941
    %944 = vmatpush1.bf16.msra.mxu0 %v938
    %945 = vmatprep.subr.bf16.mxu0 0
    %946 = vmatpush1.bf16.msra.mxu0 0
    %947 = vmatprep.subr.bf16.mxu0 0
    %948 = vmatpush1.bf16.msra.mxu0 0
    %949 = vmatprep.subr.bf16.mxu0 0
    %950 = vmatpush1.bf16.msra.mxu0 0
    %951 = vmatprep.subr.bf16.mxu0 0
    %952 = vmatpush1.bf16.msra.mxu0 0
    %953 = vmatprep.subr.bf16.mxu0 0
    %954 = vmatpush1.bf16.msra.mxu0 0
    %955 = vmatprep.subr.bf16.mxu0 0
    %956 = vmatpush1.bf16.msra.mxu0 0
    %957 = vmatprep.subr.bf16.mxu0 0
    %958 = vmatpush1.bf16.msra.mxu0 0
    %959 = vmatprep.subr.bf16.mxu0 0
    %960 = vmatpush1.bf16.msra.mxu0 0
    %961 = vmatprep.subr.bf16.mxu0 0
    %962 = vmatpush1.bf16.msra.mxu0 0
    %963 = vmatprep.subr.bf16.mxu0 0
    %964 = vmatpush1.bf16.msra.mxu0 0
    %965 = vmatprep.subr.bf16.mxu0 0
    %966 = vmatpush1.bf16.msra.mxu0 0
    %967 = vmatprep.subr.bf16.mxu0 0
    %968 = vmatpush1.bf16.msra.mxu0 0
    %969 = vmatprep.subr.bf16.mxu0 0
    %970 = vmatpush1.bf16.msra.mxu0 0
    %971 = vmatprep.subr.bf16.mxu0 0
    %972 = vmatpush1.bf16.msra.mxu0 0
    %973 = vmatprep.subr.bf16.mxu0 0
    %974 = vmatpush1.bf16.msra.mxu0 0
    %975 = vmatprep.mubr.bf16.mxu0 0
    %976 = vmatmul.mubr.bf16.gmra.mrb[0].mxu0 %v935
    %v977 = vpop.f32.mrb[0].mxu0
    %v978 = vadd.f32 0.0, %v977
    %v979 = vpop.f32.mrb[0].mxu0
    %v980 = vadd.f32 0.0, %v979
    %v981 = vpop.f32.mrb[0].mxu0
    %v982 = vpop.f32.mrb[0].mxu0
    %983 = vdwg.mxu0
    %v984 = vpack.c.bf16 %v978, %v978
    %v985 = vpack.c.bf16 %v980, %v980
    %v988 = vunpack.c.l.b16 %v984
    %v989 = vunpack.c.l.b16 %v985
    %v990 = vpack.c.b16 %v989, %v988
    %992 = vst [vmem:[#allocation2 + $0x8] sm:$0xff] %v990
    %v993 = vld [vmem:[%s6] sm:$0xf]
    %v994 = vld [vmem:[%s7] sm:$0xff]
    %996 = vset.pattern.permute.xlu0 0
    %997 = vperm.xlu0 %996, %v994
    %v998 = vpop.permute.xlu0 %997
    %1001 = vrot.lane.b32.xlu0 %v868, 124
    %v1002 = vpop.permute.xlu0 %1001
    %v1004 = vsel %vm240, %v993, 0
    %v1007 = vsel %vm244, %v1002, 0
    %1009 = vmatprep.subr.bf16.mxu0 0
    %1010 = vmatpush1.bf16.msra.mxu0 %v1007
    %1011 = vmatprep.subr.bf16.mxu0 0
    %1012 = vmatpush1.bf16.msra.mxu0 0
    %1013 = vmatprep.subr.bf16.mxu0 0
    %1014 = vmatpush1.bf16.msra.mxu0 0
    %1015 = vmatprep.subr.bf16.mxu0 0
    %1016 = vmatpush1.bf16.msra.mxu0 0
    %1017 = vmatprep.subr.bf16.mxu0 0
    %1018 = vmatpush1.bf16.msra.mxu0 0
    %1019 = vmatprep.subr.bf16.mxu0 0
    %1020 = vmatpush1.bf16.msra.mxu0 0
    %1021 = vmatprep.subr.bf16.mxu0 0
    %1022 = vmatpush1.bf16.msra.mxu0 0
    %1023 = vmatprep.subr.bf16.mxu0 0
    %1024 = vmatpush1.bf16.msra.mxu0 0
    %1025 = vmatprep.subr.bf16.mxu0 0
    %1026 = vmatpush1.bf16.msra.mxu0 0
    %1027 = vmatprep.subr.bf16.mxu0 0
    %1028 = vmatpush1.bf16.msra.mxu0 0
    %1029 = vmatprep.subr.bf16.mxu0 0
    %1030 = vmatpush1.bf16.msra.mxu0 0
    %1031 = vmatprep.subr.bf16.mxu0 0
    %1032 = vmatpush1.bf16.msra.mxu0 0
    %1033 = vmatprep.subr.bf16.mxu0 0
    %1034 = vmatpush1.bf16.msra.mxu0 0
    %1035 = vmatprep.subr.bf16.mxu0 0
    %1036 = vmatpush1.bf16.msra.mxu0 0
    %1037 = vmatprep.subr.bf16.mxu0 0
    %1038 = vmatpush1.bf16.msra.mxu0 0
    %1039 = vmatprep.subr.bf16.mxu0 0
    %1040 = vmatpush1.bf16.msra.mxu0 0
    %1041 = vmatprep.mubr.bf16.mxu0 0
    %1042 = vmatmul.mubr.bf16.gmra.mrb[0].mxu0 %v1004
    %v1043 = vpop.f32.mrb[0].mxu0
    %v1044 = vadd.f32 %v998, %v1043
    %v1045 = vpop.f32.mrb[0].mxu0
    %v1046 = vpop.f32.mrb[0].mxu0
    %v1047 = vpop.f32.mrb[0].mxu0
    %1048 = vdwg.mxu0
    %v1049 = vmax.f32 %v1044, 0.0
    %v1050 = vpack.c.bf16 %v1049, %v1049
    %v1051 = vld [vmem:[%s5] sm:$0xff]
    %v1052 = vld [vmem:[%s5 + $0x8] sm:$0xff]
    %v1055 = vunpack.c.l.b16 %v1051
    %v1056 = vunpack.c.h.b16 %v1051
    %v1057 = vunpack.c.l.b16 %v1052
    %v1058 = vunpack.c.h.b16 %v1052
    %v1059 = vpack.c.b16 %v1057, %v1055
    %v1060 = vpack.c.b16 %v1058, %v1056
    %v1064 = vsel %vm429, %v1050, 0
    %1066 = vmatprep.subr.bf16.mxu0 %v1060
    %1067 = vmatpush1.bf16.msra.mxu0 %v1059
    %1068 = vmatprep.subr.bf16.mxu0 0
    %1069 = vmatpush1.bf16.msra.mxu0 0
    %1070 = vmatprep.subr.bf16.mxu0 0
    %1071 = vmatpush1.bf16.msra.mxu0 0
    %1072 = vmatprep.subr.bf16.mxu0 0
    %1073 = vmatpush1.bf16.msra.mxu0 0
    %1074 = vmatprep.subr.bf16.mxu0 0
    %1075 = vmatpush1.bf16.msra.mxu0 0
    %1076 = vmatprep.subr.bf16.mxu0 0
    %1077 = vmatpush1.bf16.msra.mxu0 0
    %1078 = vmatprep.subr.bf16.mxu0 0
    %1079 = vmatpush1.bf16.msra.mxu0 0
    %1080 = vmatprep.subr.bf16.mxu0 0
    %1081 = vmatpush1.bf16.msra.mxu0 0
    %1082 = vmatprep.subr.bf16.mxu0 0
    %1083 = vmatpush1.bf16.msra.mxu0 0
    %1084 = vmatprep.subr.bf16.mxu0 0
    %1085 = vmatpush1.bf16.msra.mxu0 0
    %1086 = vmatprep.subr.bf16.mxu0 0
    %1087 = vmatpush1.bf16.msra.mxu0 0
    %1088 = vmatprep.subr.bf16.mxu0 0
    %1089 = vmatpush1.bf16.msra.mxu0 0
    %1090 = vmatprep.subr.bf16.mxu0 0
    %1091 = vmatpush1.bf16.msra.mxu0 0
    %1092 = vmatprep.subr.bf16.mxu0 0
    %1093 = vmatpush1.bf16.msra.mxu0 0
    %1094 = vmatprep.subr.bf16.mxu0 0
    %1095 = vmatpush1.bf16.msra.mxu0 0
    %1096 = vmatprep.subr.bf16.mxu0 0
    %1097 = vmatpush1.bf16.msra.mxu0 0
    %1098 = vmatprep.mubr.bf16.mxu0 0
    %1099 = vmatmul.mubr.bf16.gmra.mrb[0].mxu0 %v1064
    %v1100 = vpop.f32.mrb[0].mxu0
    %v1101 = vadd.f32 0.0, %v1100
    %v1102 = vpop.f32.mrb[0].mxu0
    %v1103 = vadd.f32 0.0, %v1102
    %v1104 = vpop.f32.mrb[0].mxu0
    %v1105 = vpop.f32.mrb[0].mxu0
    %1106 = vdwg.mxu0
    %v1107 = vpack.c.bf16 %v1101, %v1101
    %v1108 = vpack.c.bf16 %v1103, %v1103
    %v1111 = vunpack.c.l.b16 %v1107
    %v1112 = vunpack.c.l.b16 %v1108
    %v1113 = vpack.c.b16 %v1112, %v1111
    %1115 = vst [vmem:[#allocation2 + $0x18] sm:$0xff] %v1113
    %v1116 = vunpack.c.l.bf16 %v688
    %v1118 = vcombine.high %v1116, %v1116
    %v1120 = vsel %vm487, %v1116, 0.0
    %v1121 = vsel %vm487, %v1118, 0.0
    %v1122 = vadd.f32 %v1120, %v1121
    %1123 = vadd.xlane.f32.xlu0 %v1122
    %v1124 = vpop.xlane.xlu0 %1123
    %v1125 = vmul.f32 %v1124, %v493
    %v1126 = vpack.c.bf16 %v1125, %v1125
    %v1127 = vld [vmem:[%s8] sm:$0xf]
    %v1128 = vld [vmem:[%s9] sm:$0xff]
    %v1130 = vsel %vm240, %v1127, 0
    %v1133 = vsel %vm244, %v1126, 0
    %1135 = vmatprep.subr.bf16.mxu0 0
    %1136 = vmatpush1.bf16.msra.mxu0 %v1133
    %1137 = vmatprep.subr.bf16.mxu0 0
    %1138 = vmatpush1.bf16.msra.mxu0 0
    %1139 = vmatprep.subr.bf16.mxu0 0
    %1140 = vmatpush1.bf16.msra.mxu0 0
    %1141 = vmatprep.subr.bf16.mxu0 0
    %1142 = vmatpush1.bf16.msra.mxu0 0
    %1143 = vmatprep.subr.bf16.mxu0 0
    %1144 = vmatpush1.bf16.msra.mxu0 0
    %1145 = vmatprep.subr.bf16.mxu0 0
    %1146 = vmatpush1.bf16.msra.mxu0 0
    %1147 = vmatprep.subr.bf16.mxu0 0
    %1148 = vmatpush1.bf16.msra.mxu0 0
    %1149 = vmatprep.subr.bf16.mxu0 0
    %1150 = vmatpush1.bf16.msra.mxu0 0
    %1151 = vmatprep.subr.bf16.mxu0 0
    %1152 = vmatpush1.bf16.msra.mxu0 0
    %1153 = vmatprep.subr.bf16.mxu0 0
    %1154 = vmatpush1.bf16.msra.mxu0 0
    %1155 = vmatprep.subr.bf16.mxu0 0
    %1156 = vmatpush1.bf16.msra.mxu0 0
    %1157 = vmatprep.subr.bf16.mxu0 0
    %1158 = vmatpush1.bf16.msra.mxu0 0
    %1159 = vmatprep.subr.bf16.mxu0 0
    %1160 = vmatpush1.bf16.msra.mxu0 0
    %1161 = vmatprep.subr.bf16.mxu0 0
    %1162 = vmatpush1.bf16.msra.mxu0 0
    %1163 = vmatprep.subr.bf16.mxu0 0
    %1164 = vmatpush1.bf16.msra.mxu0 0
    %1165 = vmatprep.subr.bf16.mxu0 0
    %1166 = vmatpush1.bf16.msra.mxu0 0
    %1167 = vmatprep.mubr.bf16.mxu0 0
    %1168 = vmatmul.mubr.bf16.gmra.mrb[0].mxu0 %v1130
    %v1169 = vpop.f32.mrb[0].mxu0
    %v1170 = vadd.f32 %v1128, %v1169
    %v1171 = vpop.f32.mrb[0].mxu0
    %v1172 = vpop.f32.mrb[0].mxu0
    %v1173 = vpop.f32.mrb[0].mxu0
    %1174 = vdwg.mxu0
    %v1175 = vmax.f32 %v1170, 0.0
    %v1176 = vld [vmem:[%s10] sm:$0xf]
    %v1177 = vld [vmem:[%s10 + $0x4] sm:$0xf]
    %v1178 = vld [vmem:[%s10 + $0x8] sm:$0xf]
    %v1179 = vld [vmem:[%s10 + $0xc] sm:$0xf]
    %v1180 = vpack.c.bf16 %v1175, %v1175
    %v1185 = vunpack.c.l.b16 %v1176
    %v1186 = vunpack.c.l.b16 %v1177
    %v1187 = vunpack.c.l.b16 %v1178
    %v1188 = vunpack.c.l.b16 %v1179
    %v1189 = vpack.c.b16 %v1186, %v1185
    %v1190 = vpack.c.b16 %v1188, %v1187
    %v1192 = vsel %vm560, %v1189, 0
    %v1195 = vsel %vm560, %v1190, 0
    %v1198 = vsel %vm487, %v1180, 0
    %1200 = vmatprep.subr.bf16.mxu0 0
    %1201 = vmatpush1.bf16.msra.mxu0 %v1198
    %1202 = vmatprep.subr.bf16.mxu0 0
    %1203 = vmatpush1.bf16.msra.mxu0 0
    %1204 = vmatprep.subr.bf16.mxu0 0
    %1205 = vmatpush1.bf16.msra.mxu0 0
    %1206 = vmatprep.subr.bf16.mxu0 0
    %1207 = vmatpush1.bf16.msra.mxu0 0
    %1208 = vmatprep.subr.bf16.mxu0 0
    %1209 = vmatpush1.bf16.msra.mxu0 0
    %1210 = vmatprep.subr.bf16.mxu0 0
    %1211 = vmatpush1.bf16.msra.mxu0 0
    %1212 = vmatprep.subr.bf16.mxu0 0
    %1213 = vmatpush1.bf16.msra.mxu0 0
    %1214 = vmatprep.subr.bf16.mxu0 0
    %1215 = vmatpush1.bf16.msra.mxu0 0
    %1216 = vmatprep.subr.bf16.mxu0 0
    %1217 = vmatpush1.bf16.msra.mxu0 0
    %1218 = vmatprep.subr.bf16.mxu0 0
    %1219 = vmatpush1.bf16.msra.mxu0 0
    %1220 = vmatprep.subr.bf16.mxu0 0
    %1221 = vmatpush1.bf16.msra.mxu0 0
    %1222 = vmatprep.subr.bf16.mxu0 0
    %1223 = vmatpush1.bf16.msra.mxu0 0
    %1224 = vmatprep.subr.bf16.mxu0 0
    %1225 = vmatpush1.bf16.msra.mxu0 0
    %1226 = vmatprep.subr.bf16.mxu0 0
    %1227 = vmatpush1.bf16.msra.mxu0 0
    %1228 = vmatprep.subr.bf16.mxu0 0
    %1229 = vmatpush1.bf16.msra.mxu0 0
    %1230 = vmatprep.subr.bf16.mxu0 0
    %1231 = vmatpush1.bf16.msra.mxu0 0
    %1232 = vmatprep.mubr.bf16.mxu0 0
    %1233 = vmatmul.mubr.bf16.gmra.mrb[0].mxu0 %v1192
    %v1234 = vpop.f32.mrb[0].mxu0
    %v1235 = vadd.f32 0.0, %v1234
    %v1236 = vpop.f32.mrb[0].mxu0
    %v1237 = vpop.f32.mrb[0].mxu0
    %v1238 = vadd.f32 0.0, %v1237
    %v1239 = vpop.f32.mrb[0].mxu0
    %1240 = vmatprep.mubr.bf16.mxu0 0
    %1241 = vmatmul.mubr.bf16.gmra.mrb[0].mxu0 %v1195
    %v1242 = vpop.f32.mrb[0].mxu0
    %v1243 = vadd.f32 0.0, %v1242
    %v1244 = vpop.f32.mrb[0].mxu0
    %v1245 = vpop.f32.mrb[0].mxu0
    %v1246 = vadd.f32 0.0, %v1245
    %v1247 = vpop.f32.mrb[0].mxu0
    %1248 = vdwg.mxu0
    %v1249 = vld [vmem:[%s11] sm:$0xf]
    %v1250 = vld [vmem:[%s12] sm:$0xff]
    %1252 = vset.pattern.permute.xlu0 0
    %1253 = vperm.xlu0 %1252, %v1250
    %v1254 = vpop.permute.xlu0 %1253
    %v1257 = vsel %vm240, %v1249, 0
    %v1260 = vsel %vm244, %v728, 0
    %v1263 = vsel %vm244, %v729, 0
    %1265 = vmatprep.subr.bf16.mxu0 %v1263
    %1266 = vmatpush1.bf16.msra.mxu0 %v1260
    %1267 = vmatprep.subr.bf16.mxu0 0
    %1268 = vmatpush1.bf16.msra.mxu0 0
    %1269 = vmatprep.subr.bf16.mxu0 0
    %1270 = vmatpush1.bf16.msra.mxu0 0
    %1271 = vmatprep.subr.bf16.mxu0 0
    %1272 = vmatpush1.bf16.msra.mxu0 0
    %1273 = vmatprep.subr.bf16.mxu0 0
    %1274 = vmatpush1.bf16.msra.mxu0 0
    %1275 = vmatprep.subr.bf16.mxu0 0
    %1276 = vmatpush1.bf16.msra.mxu0 0
    %1277 = vmatprep.subr.bf16.mxu0 0
    %1278 = vmatpush1.bf16.msra.mxu0 0
    %1279 = vmatprep.subr.bf16.mxu0 0
    %1280 = vmatpush1.bf16.msra.mxu0 0
    %1281 = vmatprep.subr.bf16.mxu0 0
    %1282 = vmatpush1.bf16.msra.mxu0 0
    %1283 = vmatprep.subr.bf16.mxu0 0
    %1284 = vmatpush1.bf16.msra.mxu0 0
    %1285 = vmatprep.subr.bf16.mxu0 0
    %1286 = vmatpush1.bf16.msra.mxu0 0
    %1287 = vmatprep.subr.bf16.mxu0 0
    %1288 = vmatpush1.bf16.msra.mxu0 0
    %1289 = vmatprep.subr.bf16.mxu0 0
    %1290 = vmatpush1.bf16.msra.mxu0 0
    %1291 = vmatprep.subr.bf16.mxu0 0
    %1292 = vmatpush1.bf16.msra.mxu0 0
    %1293 = vmatprep.subr.bf16.mxu0 0
    %1294 = vmatpush1.bf16.msra.mxu0 0
    %1295 = vmatprep.subr.bf16.mxu0 0
    %1296 = vmatpush1.bf16.msra.mxu0 0
    %1297 = vmatprep.mubr.bf16.mxu0 0
    %1298 = vmatmul.mubr.bf16.gmra.mrb[0].mxu0 %v1257
    %v1299 = vpop.f32.mrb[0].mxu0
    %v1300 = vadd.f32 %v1254, %v1299
    %v1301 = vpop.f32.mrb[0].mxu0
    %v1302 = vadd.f32 %v1254, %v1301
    %v1303 = vpop.f32.mrb[0].mxu0
    %v1304 = vpop.f32.mrb[0].mxu0
    %1305 = vdwg.mxu0
    %v1306 = vmax.f32 %v1300, 0.0
    %v1307 = vmax.f32 %v1302, 0.0
    %v1308 = vpack.c.bf16 %v1306, %v1306
    %v1309 = vpack.c.bf16 %v1307, %v1307
    %v1312 = vunpack.c.l.b16 %v1308
    %v1313 = vunpack.c.l.b16 %v1309
    %v1314 = vpack.c.b16 %v1313, %v1312
    %1316 = vst [vmem:[#allocation2 + $0x28] sm:$0xff] %v1314
    %v1317 = vld [vmem:[%s13] sm:$0xf]
    %v1318 = vld [vmem:[%s13 + $0x4] sm:$0xf]
    %v1319 = vld [vmem:[%s13 + $0x8] sm:$0xf]
    %v1320 = vld [vmem:[%s13 + $0xc] sm:$0xf]
    %v1321 = vld [vmem:[#allocation2] sm:$0xff]
    %v1322 = vld [vmem:[#allocation2 + $0x8] sm:$0xff]
    %v1323 = vld [vmem:[#allocation2 + $0x10] sm:$0xff]
    %v1324 = vld [vmem:[#allocation2 + $0x18] sm:$0xff]
    %v1325 = vld [vmem:[#allocation2 + $0x20] sm:$0xff]
    %v1326 = vld [vmem:[#allocation2 + $0x28] sm:$0xff]
    %v1331 = vunpack.c.l.b16 %v1317
    %v1332 = vunpack.c.l.b16 %v1318
    %v1333 = vunpack.c.l.b16 %v1319
    %v1334 = vunpack.c.l.b16 %v1320
    %v1335 = vpack.c.b16 %v1332, %v1331
    %v1336 = vpack.c.b16 %v1334, %v1333
    %v1343 = vunpack.c.l.b16 %v1321
    %v1344 = vunpack.c.h.b16 %v1321
    %v1345 = vunpack.c.l.b16 %v1322
    %v1346 = vunpack.c.h.b16 %v1322
    %v1347 = vunpack.c.l.b16 %v1323
    %v1348 = vunpack.c.h.b16 %v1323
    %v1349 = vunpack.c.l.b16 %v1324
    %v1350 = vunpack.c.h.b16 %v1324
    %v1351 = vunpack.c.l.b16 %v1325
    %v1352 = vunpack.c.h.b16 %v1325
    %v1353 = vunpack.c.l.b16 %v1326
    %v1354 = vunpack.c.h.b16 %v1326
    %v1355 = vpack.c.b16 %v1347, %v1343
    %v1356 = vpack.c.b16 %v1348, %v1344
    %v1357 = vpack.c.b16 %v1349, %v1345
    %v1358 = vpack.c.b16 %v1350, %v1346
    %v1359 = vpack.c.b16 %v1351, %v1351
    %v1360 = vpack.c.b16 %v1352, %v1352
    %v1361 = vpack.c.b16 %v1353, %v1353
    %v1362 = vpack.c.b16 %v1354, %v1354
    %vm1367 = vcmask 195584
    %v1369 = vsel %vm1367, %v1335, 0
    %v1372 = vsel %vm1367, %v1336, 0
    %v1375 = vsel %vm487, %v1359, 0
    %v1378 = vsel %vm487, %v1360, 0
    %v1381 = vsel %vm487, %v1361, 0
    %v1384 = vsel %vm487, %v1362, 0
    %1386 = vmatprep.subr.bf16.mxu0 %v1356
    %1387 = vmatpush1.bf16.msra.mxu0 %v1355
    %1388 = vmatprep.subr.bf16.mxu0 %v1378
    %1389 = vmatpush1.bf16.msra.mxu0 %v1375
    %1390 = vmatprep.subr.bf16.mxu0 0
    %1391 = vmatpush1.bf16.msra.mxu0 0
    %1392 = vmatprep.subr.bf16.mxu0 0
    %1393 = vmatpush1.bf16.msra.mxu0 0
    %1394 = vmatprep.subr.bf16.mxu0 0
    %1395 = vmatpush1.bf16.msra.mxu0 0
    %1396 = vmatprep.subr.bf16.mxu0 0
    %1397 = vmatpush1.bf16.msra.mxu0 0
    %1398 = vmatprep.subr.bf16.mxu0 0
    %1399 = vmatpush1.bf16.msra.mxu0 0
    %1400 = vmatprep.subr.bf16.mxu0 0
    %1401 = vmatpush1.bf16.msra.mxu0 0
    %1402 = vmatprep.subr.bf16.mxu0 0
    %1403 = vmatpush1.bf16.msra.mxu0 0
    %1404 = vmatprep.subr.bf16.mxu0 0
    %1405 = vmatpush1.bf16.msra.mxu0 0
    %1406 = vmatprep.subr.bf16.mxu0 0
    %1407 = vmatpush1.bf16.msra.mxu0 0
    %1408 = vmatprep.subr.bf16.mxu0 0
    %1409 = vmatpush1.bf16.msra.mxu0 0
    %1410 = vmatprep.subr.bf16.mxu0 0
    %1411 = vmatpush1.bf16.msra.mxu0 0
    %1412 = vmatprep.subr.bf16.mxu0 0
    %1413 = vmatpush1.bf16.msra.mxu0 0
    %1414 = vmatprep.subr.bf16.mxu0 0
    %1415 = vmatpush1.bf16.msra.mxu0 0
    %1416 = vmatprep.subr.bf16.mxu0 0
    %1417 = vmatpush1.bf16.msra.mxu0 0
    %1418 = vmatprep.mubr.bf16.mxu0 0
    %1419 = vmatmul.mubr.bf16.gmra.mrb[0].mxu0 %v1369
    %v1420 = vpop.f32.mrb[0].mxu0
    %v1421 = vadd.f32 0.0, %v1420
    %v1422 = vpop.f32.mrb[0].mxu0
    %v1423 = vadd.f32 0.0, %v1422
    %v1424 = vpop.f32.mrb[0].mxu0
    %v1425 = vadd.f32 0.0, %v1424
    %v1426 = vpop.f32.mrb[0].mxu0
    %v1427 = vadd.f32 0.0, %v1426
    %1428 = vmatprep.mubr.bf16.mxu0 0
    %1429 = vmatmul.mubr.bf16.gmra.mrb[0].mxu0 %v1372
    %v1430 = vpop.f32.mrb[0].mxu0
    %v1431 = vadd.f32 0.0, %v1430
    %v1432 = vpop.f32.mrb[0].mxu0
    %v1433 = vadd.f32 0.0, %v1432
    %v1434 = vpop.f32.mrb[0].mxu0
    %v1435 = vadd.f32 0.0, %v1434
    %v1436 = vpop.f32.mrb[0].mxu0
    %v1437 = vadd.f32 0.0, %v1436
    %1438 = vdwg.mxu0
    %1439 = vmatprep.subr.bf16.mxu0 %v1358
    %1440 = vmatpush1.bf16.msra.mxu0 %v1357
    %1441 = vmatprep.subr.bf16.mxu0 %v1384
    %1442 = vmatpush1.bf16.msra.mxu0 %v1381
    %1443 = vmatprep.subr.bf16.mxu0 0
    %1444 = vmatpush1.bf16.msra.mxu0 0
    %1445 = vmatprep.subr.bf16.mxu0 0
    %1446 = vmatpush1.bf16.msra.mxu0 0
    %1447 = vmatprep.subr.bf16.mxu0 0
    %1448 = vmatpush1.bf16.msra.mxu0 0
    %1449 = vmatprep.subr.bf16.mxu0 0
    %1450 = vmatpush1.bf16.msra.mxu0 0
    %1451 = vmatprep.subr.bf16.mxu0 0
    %1452 = vmatpush1.bf16.msra.mxu0 0
    %1453 = vmatprep.subr.bf16.mxu0 0
    %1454 = vmatpush1.bf16.msra.mxu0 0
    %1455 = vmatprep.subr.bf16.mxu0 0
    %1456 = vmatpush1.bf16.msra.mxu0 0
    %1457 = vmatprep.subr.bf16.mxu0 0
    %1458 = vmatpush1.bf16.msra.mxu0 0
    %1459 = vmatprep.subr.bf16.mxu0 0
    %1460 = vmatpush1.bf16.msra.mxu0 0
    %1461 = vmatprep.subr.bf16.mxu0 0
    %1462 = vmatpush1.bf16.msra.mxu0 0
    %1463 = vmatprep.subr.bf16.mxu0 0
    %1464 = vmatpush1.bf16.msra.mxu0 0
    %1465 = vmatprep.subr.bf16.mxu0 0
    %1466 = vmatpush1.bf16.msra.mxu0 0
    %1467 = vmatprep.subr.bf16.mxu0 0
    %1468 = vmatpush1.bf16.msra.mxu0 0
    %1469 = vmatprep.subr.bf16.mxu0 0
    %1470 = vmatpush1.bf16.msra.mxu0 0
    %1471 = vmatprep.mubr.bf16.mxu0 0
    %1472 = vmatmul.mubr.bf16.gmra.mrb[0].mxu0 %v1369
    %v1473 = vpop.f32.mrb[0].mxu0
    %v1474 = vadd.f32 0.0, %v1473
    %v1475 = vpop.f32.mrb[0].mxu0
    %v1476 = vadd.f32 0.0, %v1475
    %v1477 = vpop.f32.mrb[0].mxu0
    %v1478 = vadd.f32 0.0, %v1477
    %v1479 = vpop.f32.mrb[0].mxu0
    %v1480 = vadd.f32 0.0, %v1479
    %1481 = vmatprep.mubr.bf16.mxu0 0
    %1482 = vmatmul.mubr.bf16.gmra.mrb[0].mxu0 %v1372
    %v1483 = vpop.f32.mrb[0].mxu0
    %v1484 = vadd.f32 0.0, %v1483
    %v1485 = vpop.f32.mrb[0].mxu0
    %v1486 = vadd.f32 0.0, %v1485
    %v1487 = vpop.f32.mrb[0].mxu0
    %v1488 = vadd.f32 0.0, %v1487
    %v1489 = vpop.f32.mrb[0].mxu0
    %v1490 = vadd.f32 0.0, %v1489
    %1491 = vdwg.mxu0
    %v1492 = vld [vmem:[%s14] sm:$0xff]
    %v1493 = vld [vmem:[%s14 + $0x8] sm:$0xff]
    %v1494 = vld [vmem:[%s14 + $0x10] sm:$0xff]
    %v1495 = vld [vmem:[%s14 + $0x18] sm:$0xff]
    %v1496 = vadd.f32 %v1492, %v605
    %v1497 = vadd.f32 %v1493, %v608
    %v1498 = vadd.f32 %v1494, %v613
    %v1499 = vadd.f32 %v1495, %v616
    %1501 = vset.pattern.permute.xlu0 0
    %1502 = vperm.xlu0 %1501, %v1496
    %v1503 = vpop.permute.xlu0 %1502
    %1506 = vset.pattern.permute.xlu0 0
    %1507 = vperm.xlu0 %1506, %v1497
    %v1508 = vpop.permute.xlu0 %1507
    %1511 = vset.pattern.permute.xlu0 0
    %1512 = vperm.xlu0 %1511, %v1498
    %v1513 = vpop.permute.xlu0 %1512
    %1516 = vset.pattern.permute.xlu0 0
    %1517 = vperm.xlu0 %1516, %v1499
    %v1518 = vpop.permute.xlu0 %1517
    %v1520 = vadd.f32 %v1421, %v1503
    %v1521 = vadd.f32 %v1423, %v1503
    %v1522 = vadd.f32 %v1425, %v1508
    %v1523 = vadd.f32 %v1427, %v1508
    %v1524 = vadd.f32 %v1431, %v1513
    %v1525 = vadd.f32 %v1433, %v1513
    %v1526 = vadd.f32 %v1435, %v1518
    %v1527 = vadd.f32 %v1437, %v1518
    %v1528 = vmax.f32 %v1520, 0.0
    %v1529 = vmax.f32 %v1521, 0.0
    %v1530 = vmax.f32 %v1522, 0.0
    %v1531 = vmax.f32 %v1523, 0.0
    %v1532 = vmax.f32 %v1524, 0.0
    %v1533 = vmax.f32 %v1525, 0.0
    %v1534 = vmax.f32 %v1526, 0.0
    %v1535 = vmax.f32 %v1527, 0.0
    %v1536 = vpack.c.bf16 %v1530, %v1528
    %v1537 = vpack.c.bf16 %v1531, %v1529
    %v1538 = vpack.c.bf16 %v1534, %v1532
    %v1539 = vpack.c.bf16 %v1535, %v1533
    %v1544 = vunpack.c.l.b16 %v1536
    %v1545 = vunpack.c.l.b16 %v1537
    %v1546 = vunpack.c.h.b16 %v1536
    %v1547 = vunpack.c.h.b16 %v1537
    %v1548 = vunpack.c.l.b16 %v1538
    %v1549 = vunpack.c.l.b16 %v1539
    %v1550 = vunpack.c.h.b16 %v1538
    %v1551 = vunpack.c.h.b16 %v1539
    %v1552 = vpack.c.b16 %v1545, %v1544
    %v1553 = vpack.c.b16 %v1547, %v1546
    %v1554 = vpack.c.b16 %v1549, %v1548
    %v1555 = vpack.c.b16 %v1551, %v1550
    %1560 = vst [vmem:[#allocation3] sm:$0xff] %v1552
    %1561 = vst [vmem:[#allocation3 + $0x8] sm:$0xff] %v1553
    %1562 = vst [vmem:[#allocation3 + $0x10] sm:$0xff] %v1554
    %1563 = vst [vmem:[#allocation3 + $0x18] sm:$0xff] %v1555
    %v1564 = vld [vmem:[%s14] sm:$0xff]
    %v1565 = vld [vmem:[%s14 + $0x8] sm:$0xff]
    %v1566 = vld [vmem:[%s14 + $0x10] sm:$0xff]
    %v1567 = vld [vmem:[%s14 + $0x18] sm:$0xff]
    %v1568 = vadd.f32 %v1564, %v1235
    %v1569 = vadd.f32 %v1565, %v1238
    %v1570 = vadd.f32 %v1566, %v1243
    %v1571 = vadd.f32 %v1567, %v1246
    %1573 = vset.pattern.permute.xlu0 0
    %1574 = vperm.xlu0 %1573, %v1568
    %v1575 = vpop.permute.xlu0 %1574
    %1578 = vset.pattern.permute.xlu0 0
    %1579 = vperm.xlu0 %1578, %v1569
    %v1580 = vpop.permute.xlu0 %1579
    %1583 = vset.pattern.permute.xlu0 0
    %1584 = vperm.xlu0 %1583, %v1570
    %v1585 = vpop.permute.xlu0 %1584
    %1588 = vset.pattern.permute.xlu0 0
    %1589 = vperm.xlu0 %1588, %v1571
    %v1590 = vpop.permute.xlu0 %1589
    %v1592 = vadd.f32 %v1474, %v1575
    %v1593 = vadd.f32 %v1476, %v1575
    %v1594 = vadd.f32 %v1478, %v1580
    %v1595 = vadd.f32 %v1480, %v1580
    %v1596 = vadd.f32 %v1484, %v1585
    %v1597 = vadd.f32 %v1486, %v1585
    %v1598 = vadd.f32 %v1488, %v1590
    %v1599 = vadd.f32 %v1490, %v1590
    %v1600 = vmax.f32 %v1592, 0.0
    %v1601 = vmax.f32 %v1593, 0.0
    %v1602 = vmax.f32 %v1594, 0.0
    %v1603 = vmax.f32 %v1595, 0.0
    %v1604 = vmax.f32 %v1596, 0.0
    %v1605 = vmax.f32 %v1597, 0.0
    %v1606 = vmax.f32 %v1598, 0.0
    %v1607 = vmax.f32 %v1599, 0.0
    %v1608 = vpack.c.bf16 %v1602, %v1600
    %v1609 = vpack.c.bf16 %v1603, %v1601
    %v1610 = vpack.c.bf16 %v1606, %v1604
    %v1611 = vpack.c.bf16 %v1607, %v1605
    %v1616 = vunpack.c.l.b16 %v1608
    %v1617 = vunpack.c.l.b16 %v1609
    %v1618 = vunpack.c.h.b16 %v1608
    %v1619 = vunpack.c.h.b16 %v1609
    %v1620 = vunpack.c.l.b16 %v1610
    %v1621 = vunpack.c.l.b16 %v1611
    %v1622 = vunpack.c.h.b16 %v1610
    %v1623 = vunpack.c.h.b16 %v1611
    %v1624 = vpack.c.b16 %v1617, %v1616
    %v1625 = vpack.c.b16 %v1619, %v1618
    %v1626 = vpack.c.b16 %v1621, %v1620
    %v1627 = vpack.c.b16 %v1623, %v1622
    %s1632 = scalar_lea.vmem [#allocation3], 32
    %1633 = vst [vmem:[%s1632] sm:$0xff] %v1624
    %1634 = vst [vmem:[%s1632 + $0x8] sm:$0xff] %v1625
    %1635 = vst [vmem:[%s1632 + $0x10] sm:$0xff] %v1626
    %1636 = vst [vmem:[%s1632 + $0x18] sm:$0xff] %v1627
    // Predicated region
    $region62: #{tpu_custom_call.1} parent=1 // pred_check
      _
    $region63: #{tpu_custom_call.1} parent=1 // pred_check_branch
      %1638 = sbr.rel (0) target = $region65
    $region64: #{tpu_custom_call.1} parent=1 // pred_region
      %s1640 = ssub.s32 1024, 1024
      %1641 = vsyncadd [#allocation4], %s1640
      %s1642 = sshll.u32 [#allocation3], 4
      %s1643 = int_to_ptr.vmem [resolvable:$true] %s1642
      %1648 = dma.vmem_to_hbm [thread:$0]  %s1643, 1024, %s15, [#allocation4], 128, 128, 8
    $region65: #{tpu_custom_call.1} parent=1 // pred_fallthru
      _
    // Predicated region
    $region66: #{tpu_custom_call.1} parent=1 // pred_check
      _
    $region67: #{tpu_custom_call.1} parent=1 // pred_check_branch
      %1650 = sbr.rel (0) target = $region69
    $region68: #{tpu_custom_call.1} parent=1 // pred_region
      %1651 = dma.done [#allocation4], 1024
    $region69: #{tpu_custom_call.1} parent=1 // pred_fallthru
      _
    %1652 = vsyncpa [#allocation4], 1

</llo_original>
